<compile_context>
chip_gen: v7x
topology: tpu7x:2x2x1
jax: 0.10.0
libtpu: 0.0.40
codegen_flags: <defaults>
</compile_context>

<pallas_src>
import functools

import jax
import jax.numpy as jnp
from jax.experimental import pallas as pl
from jax.experimental.pallas import tpu as pltpu


# --------------------------------------------------------------------------- #
# Kernels
# --------------------------------------------------------------------------- #
def _pass1_stats_kernel(x_ref, w1_ref, w2_ref, stats_ref, *, c_in, c_half, t_rows, w_o):
    """relu -> both 1x1-conv matmuls -> shifted per-channel sum / sum-of-squares.

    x_ref block: (t_rows, 2, Wo, 2*C_in)
      dim 1 = H parity; lanes [0:C_in] = even-W channels, [C_in:2*C_in] = odd-W.
    stats_ref block (1, 6, C_half), resident across the inner ("arbitrary") axis:
      rows 0/1 = per-channel shift (conv1 / conv2)   -- first-tile mean
      rows 2/3 = sum(y - shift), rows 4/5 = sum((y - shift)^2)
    """
    s = pl.program_id(1)
    rows = t_rows * w_o

    # Even-H rows x even-W channels feed conv1; odd-H rows x odd-W channels feed
    # conv2.  relu commutes with the sub-sample, so it is applied after slicing.
    x1 = jnp.maximum(x_ref[:, 0, :, :c_in], 0.0).reshape(rows, c_in)
    x2 = jnp.maximum(x_ref[:, 1, :, c_in:], 0.0).reshape(rows, c_in)

    y1 = jnp.dot(x1, w1_ref[...], preferred_element_type=jnp.float32)   # (rows, C_half)
    y2 = jnp.dot(x2, w2_ref[...], preferred_element_type=jnp.float32)

    @pl.when(s == 0)
    def _():
        inv = 1.0 / rows
        stats_ref[0, 0:1, :] = jnp.sum(y1, axis=0, keepdims=True) * inv
        stats_ref[0, 1:2, :] = jnp.sum(y2, axis=0, keepdims=True) * inv
        stats_ref[0, 2:6, :] = jnp.zeros((4, c_half), jnp.float32)

    d1 = y1 - stats_ref[0, 0:1, :]
    d2 = y2 - stats_ref[0, 1:2, :]
    stats_ref[0, 2:3, :] += jnp.sum(d1, axis=0, keepdims=True)
    stats_ref[0, 3:4, :] += jnp.sum(d2, axis=0, keepdims=True)
    stats_ref[0, 4:5, :] += jnp.sum(d1 * d1, axis=0, keepdims=True)
    stats_ref[0, 5:6, :] += jnp.sum(d2 * d2, axis=0, keepdims=True)


def _pass2_emit_kernel(x_ref, w1_ref, w2_ref, sb_ref, o_ref, *, c_in, c_half, t_rows, w_o):
    """Recompute the convs and emit out = y*scale + bias at true channel offsets."""
    rows = t_rows * w_o

    x1 = jnp.maximum(x_ref[:, 0, :, :c_in], 0.0).reshape(rows, c_in)
    x2 = jnp.maximum(x_ref[:, 1, :, c_in:], 0.0).reshape(rows, c_in)

    y1 = jnp.dot(x1, w1_ref[...], preferred_element_type=jnp.float32)
    y2 = jnp.dot(x2, w2_ref[...], preferred_element_type=jnp.float32)

    y1 = y1 * sb_ref[0:1, :c_half] + sb_ref[1:2, :c_half]
    y2 = y2 * sb_ref[0:1, c_half:] + sb_ref[1:2, c_half:]

    o_ref[:, :, :c_half] = y1.reshape(t_rows, w_o, c_half).astype(o_ref.dtype)
    o_ref[:, :, c_half:] = y2.reshape(t_rows, w_o, c_half).astype(o_ref.dtype)


# --------------------------------------------------------------------------- #
# Wrapper
# --------------------------------------------------------------------------- #
def _vmem_params():
    """(scoped vmem limit, physical capacity).  Channel-aware tiling uses the limit."""
    try:
        cap = pltpu.get_tpu_info().vmem_capacity_bytes
    except Exception:  # pragma: no cover - defensive: assume the smallest part (v7x)
        cap = 64 << 20
    return min(cap // 2, 64 << 20), cap


def _pick_block_rows(total_rows, w_o, c_in, c_half, budget_bytes):
    """Largest divisor of total_rows whose per-step working set fits the budget."""
    def est(t):
        # double-buffered input + output blocks + weights + rough vreg temporaries
        return (t * w_o * 4 * (10 * c_in + 8 * c_half)
                + 16 * c_in * c_half + (1 << 20))

    best = 1
    for t in range(1, total_rows + 1):
        if total_rows % t == 0 and est(t) <= budget_bytes:
            best = t
    return best, est(best)


def factorized_reduce(x_nchw, w1, w2, gamma, beta, *, eps=1e-5):
    """x_nchw: (N, C_in, H, W) f32; w1/w2: (C_out//2, C_in, 1, 1); gamma/beta: (C_out,).
    Returns (N, C_out, H//2, W//2) f32 == PyTorch FactorizedReduce forward (training BN)."""
    N, C_in, H, W = x_nchw.shape
    C_half = w1.shape[0]
    C_out = 2 * C_half
    assert w2.shape == w1.shape
    assert gamma.shape == (C_out,) and beta.shape == (C_out,)
    # torch.cat in the reference module already requires even H, W.
    assert H % 2 == 0 and W % 2 == 0, "FactorizedReduce requires even H, W"
    Ho, Wo = H // 2, W // 2

    # ---- layout plumbing: one transpose + FREE reshapes (no gathers, no pads).
    # TODO(synk): drop this transpose (and the final one) if the surrounding model
    # keeps activations in NHWC.
    x = jnp.transpose(x_nchw, (0, 2, 3, 1))                 # (N, H, W, C_in)
    x = x.reshape(N * Ho, 2, Wo, 2 * C_in)                  # H parity -> dim 1,
    #                                                          W parity -> lane halves.

    w1m = jnp.transpose(w1[:, :, 0, 0], (1, 0)).astype(jnp.float32)   # (C_in, C_half)
    w2m = jnp.transpose(w2[:, :, 0, 0], (1, 0)).astype(jnp.float32)

    # ---- channel-aware block sizing from the actual VMEM capacity.
    vmem_limit, vmem_cap = _vmem_params()
    rows_total = N * Ho
    t_rows, est = _pick_block_rows(rows_total, Wo, C_in, C_half, vmem_limit // 2)
    if est > vmem_limit:                                     # even the smallest block is huge
        vmem_limit = min(2 * est, int(0.85 * vmem_cap))
    vmem_limit = int(vmem_limit)

    n_blocks = rows_total // t_rows
    # One independent stats group per v7x TensorCore when the block count allows it.
    n_groups = 2 if (n_blocks >= 2 and n_blocks % 2 == 0) else 1
    steps = n_blocks // n_groups

    # ---------------- pass 1: conv recompute + shifted BN statistics ----------------
    kernel1 = functools.partial(_pass1_stats_kernel,
                                c_in=C_in, c_half=C_half, t_rows=t_rows, w_o=Wo)
    stats = pl.pallas_call(
        kernel1,
        grid=(n_groups, steps),
        out_shape=jax.ShapeDtypeStruct((n_groups, 6, C_half), jnp.float32),
        in_specs=[
            pl.BlockSpec((t_rows, 2, Wo, 2 * C_in), lambda g, s: (g * steps + s, 0, 0, 0)),
            pl.BlockSpec((C_in, C_half), lambda g, s: (0, 0)),
            pl.BlockSpec((C_in, C_half), lambda g, s: (0, 0)),
        ],
        out_specs=pl.BlockSpec((1, 6, C_half), lambda g, s: (g, 0, 0)),   # resident accumulator
        compiler_params=pltpu.CompilerParams(
            dimension_semantics=("parallel", "arbitrary"),
            vmem_limit_bytes=vmem_limit),
    )(x, w1m, w2m)

    # ---------------- tiny glue: merge per-group stats, fold the BN affine ----------------
    rows_per_group = (rows_total // n_groups) * Wo
    shift = stats[:, 0:2, :]                                  # (G, 2, C_half)
    ssum = stats[:, 2:4, :] / rows_per_group
    ssq = stats[:, 4:6, :] / rows_per_group
    mean_g = shift + ssum                                     # per-group channel mean
    var_g = jnp.maximum(ssq - ssum * ssum, 0.0)               # shifted -> no cancellation
    mean = jnp.mean(mean_g, axis=0)                           # (2, C_half)
    var = jnp.mean(var_g, axis=0) + jnp.mean((mean_g - mean) ** 2, axis=0)
    mean_c = mean.reshape(C_out)                              # [conv1 chans | conv2 chans]
    var_c = var.reshape(C_out)
    inv = jax.lax.rsqrt(var_c + eps)
    scale = gamma.astype(jnp.float32) * inv
    bias = beta.astype(jnp.float32) - mean_c * scale
    sb = jnp.stack([scale, bias], axis=0)                     # (2, C_out) fused scale/bias

    # ---------------- pass 2: conv + folded affine, single output write ----------------
    # TODO(synk): an optional bf16 path (bf16 x/weights, f32 accum) would halve the
    # dominant HBM streams; kept f32 here to match the reference tolerance exactly.
    kernel2 = functools.partial(_pass2_emit_kernel,
                                c_in=C_in, c_half=C_half, t_rows=t_rows, w_o=Wo)
    out = pl.pallas_call(
        kernel2,
        grid=(n_blocks,),
        out_shape=jax.ShapeDtypeStruct((rows_total, Wo, C_out), x_nchw.dtype),
        in_specs=[
            pl.BlockSpec((t_rows, 2, Wo, 2 * C_in), lambda i: (i, 0, 0, 0)),
            pl.BlockSpec((C_in, C_half), lambda i: (0, 0)),
            pl.BlockSpec((C_in, C_half), lambda i: (0, 0)),
            pl.BlockSpec((2, C_out), lambda i: (0, 0)),
        ],
        out_specs=pl.BlockSpec((t_rows, Wo, C_out), lambda i: (i, 0, 0)),
        compiler_params=pltpu.CompilerParams(
            dimension_semantics=("parallel",),
            vmem_limit_bytes=vmem_limit),
    )(x, w1m, w2m, sb)

    out = out.reshape(N, Ho, Wo, C_out)
    # TODO(synk): drop this transpose if the surrounding model consumes NHWC.
    return jnp.transpose(out, (0, 3, 1, 2))


# --------------------------------------------------------------------------- #
# Pure-JAX reference (replicates the PyTorch forward, training-mode BN)
# --------------------------------------------------------------------------- #
def _reference(x_nchw, w1, w2, gamma, beta, eps=1e-5):
    x = jnp.maximum(x_nchw, 0.0)
    c1 = jnp.einsum('nchw,oc->nohw', x[:, :, 0::2, 0::2], w1[:, :, 0, 0])
    c2 = jnp.einsum('nchw,oc->nohw', x[:, :, 1::2, 1::2], w2[:, :, 0, 0])
    out = jnp.concatenate([c1, c2], axis=1)
    mean = jnp.mean(out, axis=(0, 2, 3), keepdims=True)
    var = jnp.mean((out - mean) ** 2, axis=(0, 2, 3), keepdims=True)
    out = (out - mean) / jnp.sqrt(var + eps)
    return out * gamma[None, :, None, None] + beta[None, :, None, None]


if __name__ == "__main__":
    key = jax.random.PRNGKey(0)
    k_x, k_w1, k_w2, k_g, k_b = jax.random.split(key, 5)

    N, C_in, H, W = 2, 4, 16, 16
    C_out = 8
    C_half = C_out // 2

    x = jax.random.normal(k_x, (N, C_in, H, W), dtype=jnp.float32)
    w1 = 0.1 * jax.random.normal(k_w1, (C_half, C_in, 1, 1), dtype=jnp.float32)
    w2 = 0.1 * jax.random.normal(k_w2, (C_half, C_in, 1, 1), dtype=jnp.float32)
    gamma = 1.0 + 0.1 * jax.random.normal(k_g, (C_out,), dtype=jnp.float32)
    beta = 0.1 * jax.random.normal(k_b, (C_out,), dtype=jnp.float32)

    fr = jax.jit(factorized_reduce)
    out = jax.block_until_ready(fr(x, w1, w2, gamma, beta))

    ref = _reference(x, w1, w2, gamma, beta)
    assert out.shape == (N, C_out, H // 2, W // 2), out.shape
    assert jnp.allclose(out, ref, atol=1e-4, rtol=1e-4), "mismatch vs reference"

    print("KERNEL_OK")
</pallas_src>

<mosaic_0001>
module attributes {stable_mosaic.version = 11 : i64} {
  func.func @_pass1_stats_kernel(%arg0: i32, %arg1: i32, %arg2: memref<16x2x8x8xf32, #tpu.memory_space<vmem>>, %arg3: memref<4x4xf32, #tpu.memory_space<vmem>>, %arg4: memref<4x4xf32, #tpu.memory_space<vmem>>, %arg5: memref<1x6x4xf32, #tpu.memory_space<vmem>>) attributes {dimension_semantics = [#tpu.dimension_semantics<parallel>, #tpu.dimension_semantics<arbitrary>], iteration_bounds = array<i64: 1, 1>, scalar_prefetch = 0 : i64, scratch_operands = 0 : i64, tpu.core_type = #tpu.core_type<tc>, window_params = [{transform_indices = @transform_0, window_bounds = array<i64: 16, 2, 8, 8>}, {pipeline_mode = #tpu.pipeline_mode<synchronous>, transform_indices = @transform_1, window_bounds = array<i64: 4, 4>}, {pipeline_mode = #tpu.pipeline_mode<synchronous>, transform_indices = @transform_2, window_bounds = array<i64: 4, 4>}, {transform_indices = @transform_3, window_bounds = array<i64: 1, 6, 4>}]} {
    %c0 = arith.constant 0 : index
    %c0_0 = arith.constant 0 : index
    %c0_1 = arith.constant 0 : index
    %c0_2 = arith.constant 0 : index
    %0 = vector.load %arg2[%c0, %c0_0, %c0_1, %c0_2] : memref<16x2x8x8xf32, #tpu.memory_space<vmem>>, vector<16x1x8x4xf32>
    %1 = vector.shape_cast %0 : vector<16x1x8x4xf32> to vector<16x8x4xf32>
    %cst = arith.constant 0.000000e+00 : f32
    %2 = vector.broadcast %cst : f32 to vector<16x8x4xf32>
    %3 = arith.maximumf %1, %2 : vector<16x8x4xf32>
    %4 = vector.shape_cast %3 : vector<16x8x4xf32> to vector<128x4xf32>
    %c0_3 = arith.constant 0 : index
    %c1 = arith.constant 1 : index
    %c0_4 = arith.constant 0 : index
    %c4 = arith.constant 4 : index
    %5 = vector.load %arg2[%c0_3, %c1, %c0_4, %c4] : memref<16x2x8x8xf32, #tpu.memory_space<vmem>>, vector<16x1x8x4xf32>
    %6 = vector.shape_cast %5 : vector<16x1x8x4xf32> to vector<16x8x4xf32>
    %cst_5 = arith.constant 0.000000e+00 : f32
    %7 = vector.broadcast %cst_5 : f32 to vector<16x8x4xf32>
    %8 = arith.maximumf %6, %7 : vector<16x8x4xf32>
    %9 = vector.shape_cast %8 : vector<16x8x4xf32> to vector<128x4xf32>
    %c0_6 = arith.constant 0 : index
    %c0_7 = arith.constant 0 : index
    %10 = vector.load %arg3[%c0_6, %c0_7] : memref<4x4xf32, #tpu.memory_space<vmem>>, vector<4x4xf32>
    %cst_8 = arith.constant dense<0.000000e+00> : vector<128x4xf32>
    %11 = tpu.matmul %4, %10, %cst_8 {dimension_numbers = #tpu.dot_dimension_numbers<[1], [0], [0], [1], [0, 0, 1, 1], [], []>} : vector<128x4xf32>, vector<4x4xf32>, vector<128x4xf32> -> vector<128x4xf32>
    %c0_9 = arith.constant 0 : index
    %c0_10 = arith.constant 0 : index
    %12 = vector.load %arg4[%c0_9, %c0_10] : memref<4x4xf32, #tpu.memory_space<vmem>>, vector<4x4xf32>
    %cst_11 = arith.constant dense<0.000000e+00> : vector<128x4xf32>
    %13 = tpu.matmul %9, %12, %cst_11 {dimension_numbers = #tpu.dot_dimension_numbers<[1], [0], [0], [1], [0, 0, 1, 1], [], []>} : vector<128x4xf32>, vector<4x4xf32>, vector<128x4xf32> -> vector<128x4xf32>
    %c0_i32 = arith.constant 0 : i32
    %14 = arith.cmpi eq, %arg1, %c0_i32 : i32
    %15 = arith.extui %14 : i1 to i32
    %c0_i32_12 = arith.constant 0 : i32
    %16 = arith.cmpi ne, %15, %c0_i32_12 : i32
    scf.if %16 {
      %cst_44 = arith.constant dense<0.000000e+00> : vector<4xf32>
      %59 = vector.multi_reduction <add>, %11, %cst_44 [0] : vector<128x4xf32> to vector<4xf32>
      %60 = vector.shape_cast %59 : vector<4xf32> to vector<1x4xf32>
      %cst_45 = arith.constant 7.812500e-03 : f32
      %61 = vector.broadcast %cst_45 : f32 to vector<1x4xf32>
      %62 = arith.mulf %60, %61 : vector<1x4xf32>
      %c0_46 = arith.constant 0 : index
      %c0_47 = arith.constant 0 : index
      %c0_48 = arith.constant 0 : index
      %63 = vector.load %arg5[%c0_46, %c0_47, %c0_48] : memref<1x6x4xf32, #tpu.memory_space<vmem>>, vector<1x1x4xf32>
      %64 = vector.shape_cast %63 : vector<1x1x4xf32> to vector<1x4xf32>
      %65 = vector.shape_cast %62 : vector<1x4xf32> to vector<1x1x4xf32>
      tpu.vector_store %arg5[%c0_46, %c0_47, %c0_48], %65 {strides = array<i32>} : memref<1x6x4xf32, #tpu.memory_space<vmem>>, vector<1x1x4xf32>,
      %cst_49 = arith.constant dense<0.000000e+00> : vector<4xf32>
      %66 = vector.multi_reduction <add>, %13, %cst_49 [0] : vector<128x4xf32> to vector<4xf32>
      %67 = vector.shape_cast %66 : vector<4xf32> to vector<1x4xf32>
      %cst_50 = arith.constant 7.812500e-03 : f32
      %68 = vector.broadcast %cst_50 : f32 to vector<1x4xf32>
      %69 = arith.mulf %67, %68 : vector<1x4xf32>
      %c0_51 = arith.constant 0 : index
      %c1_52 = arith.constant 1 : index
      %c0_53 = arith.constant 0 : index
      %70 = vector.load %arg5[%c0_51, %c1_52, %c0_53] : memref<1x6x4xf32, #tpu.memory_space<vmem>>, vector<1x1x4xf32>
      %71 = vector.shape_cast %70 : vector<1x1x4xf32> to vector<1x4xf32>
      %72 = vector.shape_cast %69 : vector<1x4xf32> to vector<1x1x4xf32>
      tpu.vector_store %arg5[%c0_51, %c1_52, %c0_53], %72 {strides = array<i32>} : memref<1x6x4xf32, #tpu.memory_space<vmem>>, vector<1x1x4xf32>,
      %cst_54 = arith.constant 0.000000e+00 : f32
      %73 = vector.broadcast %cst_54 : f32 to vector<4x4xf32>
      %c0_55 = arith.constant 0 : index
      %c2_56 = arith.constant 2 : index
      %c0_57 = arith.constant 0 : index
      %74 = vector.load %arg5[%c0_55, %c2_56, %c0_57] : memref<1x6x4xf32, #tpu.memory_space<vmem>>, vector<1x4x4xf32>
      %75 = vector.shape_cast %74 : vector<1x4x4xf32> to vector<4x4xf32>
      %76 = vector.shape_cast %73 : vector<4x4xf32> to vector<1x4x4xf32>
      tpu.vector_store %arg5[%c0_55, %c2_56, %c0_57], %76 {strides = array<i32>} : memref<1x6x4xf32, #tpu.memory_space<vmem>>, vector<1x4x4xf32>,
    } else {
    }
    %c0_13 = arith.constant 0 : index
    %c0_14 = arith.constant 0 : index
    %c0_15 = arith.constant 0 : index
    %17 = vector.load %arg5[%c0_13, %c0_14, %c0_15] : memref<1x6x4xf32, #tpu.memory_space<vmem>>, vector<1x1x4xf32>
    %18 = vector.shape_cast %17 : vector<1x1x4xf32> to vector<1x4xf32>
    %19 = vector.broadcast %18 : vector<1x4xf32> to vector<128x4xf32>
    %20 = arith.subf %11, %19 : vector<128x4xf32>
    %c0_16 = arith.constant 0 : index
    %c1_17 = arith.constant 1 : index
    %c0_18 = arith.constant 0 : index
    %21 = vector.load %arg5[%c0_16, %c1_17, %c0_18] : memref<1x6x4xf32, #tpu.memory_space<vmem>>, vector<1x1x4xf32>
    %22 = vector.shape_cast %21 : vector<1x1x4xf32> to vector<1x4xf32>
    %23 = vector.broadcast %22 : vector<1x4xf32> to vector<128x4xf32>
    %24 = arith.subf %13, %23 : vector<128x4xf32>
    %c0_19 = arith.constant 0 : index
    %c2 = arith.constant 2 : index
    %c0_20 = arith.constant 0 : index
    %25 = vector.load %arg5[%c0_19, %c2, %c0_20] : memref<1x6x4xf32, #tpu.memory_space<vmem>>, vector<1x1x4xf32>
    %26 = vector.shape_cast %25 : vector<1x1x4xf32> to vector<1x4xf32>
    %cst_21 = arith.constant dense<0.000000e+00> : vector<4xf32>
    %27 = vector.multi_reduction <add>, %20, %cst_21 [0] : vector<128x4xf32> to vector<4xf32>
    %28 = vector.shape_cast %27 : vector<4xf32> to vector<1x4xf32>
    %29 = arith.addf %26, %28 : vector<1x4xf32>
    %c0_22 = arith.constant 0 : index
    %c2_23 = arith.constant 2 : index
    %c0_24 = arith.constant 0 : index
    %30 = vector.load %arg5[%c0_22, %c2_23, %c0_24] : memref<1x6x4xf32, #tpu.memory_space<vmem>>, vector<1x1x4xf32>
    %31 = vector.shape_cast %30 : vector<1x1x4xf32> to vector<1x4xf32>
    %32 = vector.shape_cast %29 : vector<1x4xf32> to vector<1x1x4xf32>
    tpu.vector_store %arg5[%c0_22, %c2_23, %c0_24], %32 {strides = array<i32>} : memref<1x6x4xf32, #tpu.memory_space<vmem>>, vector<1x1x4xf32>,
    %c0_25 = arith.constant 0 : index
    %c3 = arith.constant 3 : index
    %c0_26 = arith.constant 0 : index
    %33 = vector.load %arg5[%c0_25, %c3, %c0_26] : memref<1x6x4xf32, #tpu.memory_space<vmem>>, vector<1x1x4xf32>
    %34 = vector.shape_cast %33 : vector<1x1x4xf32> to vector<1x4xf32>
    %cst_27 = arith.constant dense<0.000000e+00> : vector<4xf32>
    %35 = vector.multi_reduction <add>, %24, %cst_27 [0] : vector<128x4xf32> to vector<4xf32>
    %36 = vector.shape_cast %35 : vector<4xf32> to vector<1x4xf32>
    %37 = arith.addf %34, %36 : vector<1x4xf32>
    %c0_28 = arith.constant 0 : index
    %c3_29 = arith.constant 3 : index
    %c0_30 = arith.constant 0 : index
    %38 = vector.load %arg5[%c0_28, %c3_29, %c0_30] : memref<1x6x4xf32, #tpu.memory_space<vmem>>, vector<1x1x4xf32>
    %39 = vector.shape_cast %38 : vector<1x1x4xf32> to vector<1x4xf32>
    %40 = vector.shape_cast %37 : vector<1x4xf32> to vector<1x1x4xf32>
    tpu.vector_store %arg5[%c0_28, %c3_29, %c0_30], %40 {strides = array<i32>} : memref<1x6x4xf32, #tpu.memory_space<vmem>>, vector<1x1x4xf32>,
    %c0_31 = arith.constant 0 : index
    %c4_32 = arith.constant 4 : index
    %c0_33 = arith.constant 0 : index
    %41 = vector.load %arg5[%c0_31, %c4_32, %c0_33] : memref<1x6x4xf32, #tpu.memory_space<vmem>>, vector<1x1x4xf32>
    %42 = vector.shape_cast %41 : vector<1x1x4xf32> to vector<1x4xf32>
    %43 = arith.mulf %20, %20 : vector<128x4xf32>
    %cst_34 = arith.constant dense<0.000000e+00> : vector<4xf32>
    %44 = vector.multi_reduction <add>, %43, %cst_34 [0] : vector<128x4xf32> to vector<4xf32>
    %45 = vector.shape_cast %44 : vector<4xf32> to vector<1x4xf32>
    %46 = arith.addf %42, %45 : vector<1x4xf32>
    %c0_35 = arith.constant 0 : index
    %c4_36 = arith.constant 4 : index
    %c0_37 = arith.constant 0 : index
    %47 = vector.load %arg5[%c0_35, %c4_36, %c0_37] : memref<1x6x4xf32, #tpu.memory_space<vmem>>, vector<1x1x4xf32>
    %48 = vector.shape_cast %47 : vector<1x1x4xf32> to vector<1x4xf32>
    %49 = vector.shape_cast %46 : vector<1x4xf32> to vector<1x1x4xf32>
    tpu.vector_store %arg5[%c0_35, %c4_36, %c0_37], %49 {strides = array<i32>} : memref<1x6x4xf32, #tpu.memory_space<vmem>>, vector<1x1x4xf32>,
    %c0_38 = arith.constant 0 : index
    %c5 = arith.constant 5 : index
    %c0_39 = arith.constant 0 : index
    %50 = vector.load %arg5[%c0_38, %c5, %c0_39] : memref<1x6x4xf32, #tpu.memory_space<vmem>>, vector<1x1x4xf32>
    %51 = vector.shape_cast %50 : vector<1x1x4xf32> to vector<1x4xf32>
    %52 = arith.mulf %24, %24 : vector<128x4xf32>
    %cst_40 = arith.constant dense<0.000000e+00> : vector<4xf32>
    %53 = vector.multi_reduction <add>, %52, %cst_40 [0] : vector<128x4xf32> to vector<4xf32>
    %54 = vector.shape_cast %53 : vector<4xf32> to vector<1x4xf32>
    %55 = arith.addf %51, %54 : vector<1x4xf32>
    %c0_41 = arith.constant 0 : index
    %c5_42 = arith.constant 5 : index
    %c0_43 = arith.constant 0 : index
    %56 = vector.load %arg5[%c0_41, %c5_42, %c0_43] : memref<1x6x4xf32, #tpu.memory_space<vmem>>, vector<1x1x4xf32>
    %57 = vector.shape_cast %56 : vector<1x1x4xf32> to vector<1x4xf32>
    %58 = vector.shape_cast %55 : vector<1x4xf32> to vector<1x1x4xf32>
    tpu.vector_store %arg5[%c0_41, %c5_42, %c0_43], %58 {strides = array<i32>} : memref<1x6x4xf32, #tpu.memory_space<vmem>>, vector<1x1x4xf32>,
    return
  }
  func.func @transform_0(%arg0: i32, %arg1: i32) -> (i32, i32, i32, i32) {
    %c1_i32 = arith.constant 1 : i32
    %0 = arith.muli %arg0, %c1_i32 : i32
    %1 = arith.addi %0, %arg1 : i32
    %c0_i32 = arith.constant 0 : i32
    %c0_i32_0 = arith.constant 0 : i32
    %c0_i32_1 = arith.constant 0 : i32
    %c0_i32_2 = arith.constant 0 : i32
    return %1, %c0_i32, %c0_i32_0, %c0_i32_1 : i32, i32, i32, i32
  }
  func.func @transform_1(%arg0: i32, %arg1: i32) -> (i32, i32) {
    %c0_i32 = arith.constant 0 : i32
    %c0_i32_0 = arith.constant 0 : i32
    %c0_i32_1 = arith.constant 0 : i32
    return %c0_i32, %c0_i32_0 : i32, i32
  }
  func.func @transform_2(%arg0: i32, %arg1: i32) -> (i32, i32) {
    %c0_i32 = arith.constant 0 : i32
    %c0_i32_0 = arith.constant 0 : i32
    %c0_i32_1 = arith.constant 0 : i32
    return %c0_i32, %c0_i32_0 : i32, i32
  }
  func.func @transform_3(%arg0: i32, %arg1: i32) -> (i32, i32, i32) {
    %c0_i32 = arith.constant 0 : i32
    %c0_i32_0 = arith.constant 0 : i32
    %c0_i32_1 = arith.constant 0 : i32
    return %arg0, %c0_i32, %c0_i32_0 : i32, i32, i32
  }
}

module attributes {stable_mosaic.version = 11 : i64} {
  func.func @_pass2_emit_kernel(%arg0: i32, %arg1: memref<16x2x8x8xf32, #tpu.memory_space<vmem>>, %arg2: memref<4x4xf32, #tpu.memory_space<vmem>>, %arg3: memref<4x4xf32, #tpu.memory_space<vmem>>, %arg4: memref<2x8xf32, #tpu.memory_space<vmem>>, %arg5: memref<16x8x8xf32, #tpu.memory_space<vmem>>) attributes {dimension_semantics = [#tpu.dimension_semantics<parallel>], iteration_bounds = array<i64: 1>, scalar_prefetch = 0 : i64, scratch_operands = 0 : i64, tpu.core_type = #tpu.core_type<tc>, window_params = [{transform_indices = @transform_0, window_bounds = array<i64: 16, 2, 8, 8>}, {pipeline_mode = #tpu.pipeline_mode<synchronous>, transform_indices = @transform_1, window_bounds = array<i64: 4, 4>}, {pipeline_mode = #tpu.pipeline_mode<synchronous>, transform_indices = @transform_2, window_bounds = array<i64: 4, 4>}, {pipeline_mode = #tpu.pipeline_mode<synchronous>, transform_indices = @transform_3, window_bounds = array<i64: 2, 8>}, {transform_indices = @transform_4, window_bounds = array<i64: 16, 8, 8>}]} {
    %c0 = arith.constant 0 : index
    %c0_0 = arith.constant 0 : index
    %c0_1 = arith.constant 0 : index
    %c0_2 = arith.constant 0 : index
    %0 = vector.load %arg1[%c0, %c0_0, %c0_1, %c0_2] : memref<16x2x8x8xf32, #tpu.memory_space<vmem>>, vector<16x1x8x4xf32>
    %1 = vector.shape_cast %0 : vector<16x1x8x4xf32> to vector<16x8x4xf32>
    %cst = arith.constant 0.000000e+00 : f32
    %2 = vector.broadcast %cst : f32 to vector<16x8x4xf32>
    %3 = arith.maximumf %1, %2 : vector<16x8x4xf32>
    %4 = vector.shape_cast %3 : vector<16x8x4xf32> to vector<128x4xf32>
    %c0_3 = arith.constant 0 : index
    %c1 = arith.constant 1 : index
    %c0_4 = arith.constant 0 : index
    %c4 = arith.constant 4 : index
    %5 = vector.load %arg1[%c0_3, %c1, %c0_4, %c4] : memref<16x2x8x8xf32, #tpu.memory_space<vmem>>, vector<16x1x8x4xf32>
    %6 = vector.shape_cast %5 : vector<16x1x8x4xf32> to vector<16x8x4xf32>
    %cst_5 = arith.constant 0.000000e+00 : f32
    %7 = vector.broadcast %cst_5 : f32 to vector<16x8x4xf32>
    %8 = arith.maximumf %6, %7 : vector<16x8x4xf32>
    %9 = vector.shape_cast %8 : vector<16x8x4xf32> to vector<128x4xf32>
    %c0_6 = arith.constant 0 : index
    %c0_7 = arith.constant 0 : index
    %10 = vector.load %arg2[%c0_6, %c0_7] : memref<4x4xf32, #tpu.memory_space<vmem>>, vector<4x4xf32>
    %cst_8 = arith.constant dense<0.000000e+00> : vector<128x4xf32>
    %11 = tpu.matmul %4, %10, %cst_8 {dimension_numbers = #tpu.dot_dimension_numbers<[1], [0], [0], [1], [0, 0, 1, 1], [], []>} : vector<128x4xf32>, vector<4x4xf32>, vector<128x4xf32> -> vector<128x4xf32>
    %c0_9 = arith.constant 0 : index
    %c0_10 = arith.constant 0 : index
    %12 = vector.load %arg3[%c0_9, %c0_10] : memref<4x4xf32, #tpu.memory_space<vmem>>, vector<4x4xf32>
    %cst_11 = arith.constant dense<0.000000e+00> : vector<128x4xf32>
    %13 = tpu.matmul %9, %12, %cst_11 {dimension_numbers = #tpu.dot_dimension_numbers<[1], [0], [0], [1], [0, 0, 1, 1], [], []>} : vector<128x4xf32>, vector<4x4xf32>, vector<128x4xf32> -> vector<128x4xf32>
    %c0_12 = arith.constant 0 : index
    %c0_13 = arith.constant 0 : index
    %14 = vector.load %arg4[%c0_12, %c0_13] : memref<2x8xf32, #tpu.memory_space<vmem>>, vector<1x4xf32>
    %15 = vector.broadcast %14 : vector<1x4xf32> to vector<128x4xf32>
    %16 = arith.mulf %11, %15 : vector<128x4xf32>
    %c1_14 = arith.constant 1 : index
    %c0_15 = arith.constant 0 : index
    %17 = vector.load %arg4[%c1_14, %c0_15] : memref<2x8xf32, #tpu.memory_space<vmem>>, vector<1x4xf32>
    %18 = vector.broadcast %17 : vector<1x4xf32> to vector<128x4xf32>
    %19 = arith.addf %16, %18 : vector<128x4xf32>
    %c0_16 = arith.constant 0 : index
    %c4_17 = arith.constant 4 : index
    %20 = vector.load %arg4[%c0_16, %c4_17] : memref<2x8xf32, #tpu.memory_space<vmem>>, vector<1x4xf32>
    %21 = vector.broadcast %20 : vector<1x4xf32> to vector<128x4xf32>
    %22 = arith.mulf %13, %21 : vector<128x4xf32>
    %c1_18 = arith.constant 1 : index
    %c4_19 = arith.constant 4 : index
    %23 = vector.load %arg4[%c1_18, %c4_19] : memref<2x8xf32, #tpu.memory_space<vmem>>, vector<1x4xf32>
    %24 = vector.broadcast %23 : vector<1x4xf32> to vector<128x4xf32>
    %25 = arith.addf %22, %24 : vector<128x4xf32>
    %26 = vector.shape_cast %19 : vector<128x4xf32> to vector<16x8x4xf32>
    %c0_20 = arith.constant 0 : index
    %c0_21 = arith.constant 0 : index
    %c0_22 = arith.constant 0 : index
    %27 = vector.load %arg5[%c0_20, %c0_21, %c0_22] : memref<16x8x8xf32, #tpu.memory_space<vmem>>, vector<16x8x4xf32>
    tpu.vector_store %arg5[%c0_20, %c0_21, %c0_22], %26 {strides = array<i32>} : memref<16x8x8xf32, #tpu.memory_space<vmem>>, vector<16x8x4xf32>,
    %28 = vector.shape_cast %25 : vector<128x4xf32> to vector<16x8x4xf32>
    %c0_23 = arith.constant 0 : index
    %c0_24 = arith.constant 0 : index
    %c4_25 = arith.constant 4 : index
    %29 = vector.load %arg5[%c0_23, %c0_24, %c4_25] : memref<16x8x8xf32, #tpu.memory_space<vmem>>, vector<16x8x4xf32>
    tpu.vector_store %arg5[%c0_23, %c0_24, %c4_25], %28 {strides = array<i32>} : memref<16x8x8xf32, #tpu.memory_space<vmem>>, vector<16x8x4xf32>,
    return
  }
  func.func @transform_0(%arg0: i32) -> (i32, i32, i32, i32) {
    %c0_i32 = arith.constant 0 : i32
    %c0_i32_0 = arith.constant 0 : i32
    %c0_i32_1 = arith.constant 0 : i32
    %c0_i32_2 = arith.constant 0 : i32
    return %arg0, %c0_i32, %c0_i32_0, %c0_i32_1 : i32, i32, i32, i32
  }
  func.func @transform_1(%arg0: i32) -> (i32, i32) {
    %c0_i32 = arith.constant 0 : i32
    %c0_i32_0 = arith.constant 0 : i32
    %c0_i32_1 = arith.constant 0 : i32
    return %c0_i32, %c0_i32_0 : i32, i32
  }
  func.func @transform_2(%arg0: i32) -> (i32, i32) {
    %c0_i32 = arith.constant 0 : i32
    %c0_i32_0 = arith.constant 0 : i32
    %c0_i32_1 = arith.constant 0 : i32
    return %c0_i32, %c0_i32_0 : i32, i32
  }
  func.func @transform_3(%arg0: i32) -> (i32, i32) {
    %c0_i32 = arith.constant 0 : i32
    %c0_i32_0 = arith.constant 0 : i32
    %c0_i32_1 = arith.constant 0 : i32
    return %c0_i32, %c0_i32_0 : i32, i32
  }
  func.func @transform_4(%arg0: i32) -> (i32, i32, i32) {
    %c0_i32 = arith.constant 0 : i32
    %c0_i32_0 = arith.constant 0 : i32
    %c0_i32_1 = arith.constant 0 : i32
    return %arg0, %c0_i32, %c0_i32_0 : i32, i32, i32
  }
}

</mosaic_0001>

<llo_original>
// kernel: factorized_reduce.2
$region0: #{factorized_reduce.2}
  #allocation0 [shape = 'u32[]', space=smem, size = 0x4, offset = 0x4, fixed_abs, tag = 'smem constant byte address 0x4 - core index']
  #allocation1 [shape = 'u32[144,128]{1,0:T(1,128)}', space=vmem, size = 0x12000, scoped, tag = 'internal scratch']
  %s0 = inlined_call_operand.vmem [shape: f32[16,2,8,8], index: 0, kind: input, shape index: {}]
  %s1 = inlined_call_operand.vmem [shape: f32[4,4], index: 1, kind: input, shape index: {}]
  %s2 = inlined_call_operand.vmem [shape: f32[4,4], index: 2, kind: input, shape index: {}]
  %s3 = inlined_call_operand.vmem [shape: f32[1,6,4], index: 3, kind: output, shape index: {}]
  %s4 = sld [smem:[#allocation0]]
  $region26: #{factorized_reduce.2} parent=0
    _
  %s6 = ssub.s32 1, %s4
  %s7 = scalar_select 0, %s6, %s4
  // Predicated region
  $region2: #{factorized_reduce.2} parent=0 // pred_check
    _
  $region3: #{factorized_reduce.2} parent=0 // pred_check_branch
    %9 = sbr.rel (0) target = $region5
  $region4: #{factorized_reduce.2} parent=0 // pred_region
    %s10 = sadd.s32 0, 0
    %s11 = smul.u32 16, %s10
    %p12 = scmp.lt.s32.totalorder %s11, 15
    %s13 = scalar_select %p12, %s11, 15
    %s14 = smul.addr %s13, 2
    %s15 = smul.addr %s14, 8
    %s16 = scalar_lea.vmem %s0, %s15
    %s17 = sadd.s32 0, 0
    %s18 = smul.u32 16, %s17
  $region5: #{factorized_reduce.2} parent=0 // pred_fallthru
    _
  // Predicated region
  $region6: #{factorized_reduce.2} parent=0 // pred_check
    _
  $region7: #{factorized_reduce.2} parent=0 // pred_check_branch
    %20 = sbr.rel (0) target = $region9
  $region8: #{factorized_reduce.2} parent=0 // pred_region
    _
  $region9: #{factorized_reduce.2} parent=0 // pred_fallthru
    _
  // Predicated region
  $region10: #{factorized_reduce.2} parent=0 // pred_check
    _
  $region11: #{factorized_reduce.2} parent=0 // pred_check_branch
    %22 = sbr.rel (0) target = $region13
  $region12: #{factorized_reduce.2} parent=0 // pred_region
    _
  $region13: #{factorized_reduce.2} parent=0 // pred_fallthru
    _
  %s23 = sadd.s32 0, 0
  %s24 = smul.u32 16, %s23
  %p25 = scmp.lt.s32.totalorder %s24, 15
  %s26 = scalar_select %p25, %s24, 15
  %s27 = smul.addr %s26, 2
  %s28 = smul.addr %s27, 8
  %s29 = scalar_lea.vmem %s0, %s28
  %s30 = sadd.s32 0, 0
  %s31 = smul.u32 16, %s30
  %p32 = scmp.lt.s32.totalorder %s31, 15
  %s33 = scalar_select %p32, %s31, 15
  %s34 = smul.addr %s33, 2
  %s35 = smul.addr %s34, 8
  %s36 = scalar_lea.vmem %s0, %s35
  %s37 = sadd.s32 0, 0
  %s38 = smul.u32 16, %s37
  %v39 = vld [vmem:[%s36] sm:$0xff]
  %v40 = vld [vmem:[%s36 + $0x10] sm:$0xff]
  %v41 = vld [vmem:[%s36 + $0x20] sm:$0xff]
  %v42 = vld [vmem:[%s36 + $0x30] sm:$0xff]
  %v43 = vld [vmem:[%s36 + $0x40] sm:$0xff]
  %v44 = vld [vmem:[%s36 + $0x50] sm:$0xff]
  %v45 = vld [vmem:[%s36 + $0x60] sm:$0xff]
  %v46 = vld [vmem:[%s36 + $0x70] sm:$0xff]
  %v47 = vld [vmem:[%s36 + $0x80] sm:$0xff]
  %v48 = vld [vmem:[%s36 + $0x90] sm:$0xff]
  %v49 = vld [vmem:[%s36 + $0xa0] sm:$0xff]
  %v50 = vld [vmem:[%s36 + $0xb0] sm:$0xff]
  %v51 = vld [vmem:[%s36 + $0xc0] sm:$0xff]
  %v52 = vld [vmem:[%s36 + $0xd0] sm:$0xff]
  %v53 = vld [vmem:[%s36 + $0xe0] sm:$0xff]
  %v54 = vld [vmem:[%s36 + $0xf0] sm:$0xff]
  %v55 = vmax.f32 %v39, 0.0
  %v56 = vmax.f32 %v40, 0.0
  %v57 = vmax.f32 %v41, 0.0
  %v58 = vmax.f32 %v42, 0.0
  %v59 = vmax.f32 %v43, 0.0
  %v60 = vmax.f32 %v44, 0.0
  %v61 = vmax.f32 %v45, 0.0
  %v62 = vmax.f32 %v46, 0.0
  %v63 = vmax.f32 %v47, 0.0
  %v64 = vmax.f32 %v48, 0.0
  %v65 = vmax.f32 %v49, 0.0
  %v66 = vmax.f32 %v50, 0.0
  %v67 = vmax.f32 %v51, 0.0
  %v68 = vmax.f32 %v52, 0.0
  %v69 = vmax.f32 %v53, 0.0
  %v70 = vmax.f32 %v54, 0.0
  %s71 = scalar_lea.vmem %s36, 8
  %v72 = vld [vmem:[%s71] sm:$0xff]
  %v73 = vld [vmem:[%s71 + $0x10] sm:$0xff]
  %v74 = vld [vmem:[%s71 + $0x20] sm:$0xff]
  %v75 = vld [vmem:[%s71 + $0x30] sm:$0xff]
  %v76 = vld [vmem:[%s71 + $0x40] sm:$0xff]
  %v77 = vld [vmem:[%s71 + $0x50] sm:$0xff]
  %v78 = vld [vmem:[%s71 + $0x60] sm:$0xff]
  %v79 = vld [vmem:[%s71 + $0x70] sm:$0xff]
  %v80 = vld [vmem:[%s71 + $0x80] sm:$0xff]
  %v81 = vld [vmem:[%s71 + $0x90] sm:$0xff]
  %v82 = vld [vmem:[%s71 + $0xa0] sm:$0xff]
  %v83 = vld [vmem:[%s71 + $0xb0] sm:$0xff]
  %v84 = vld [vmem:[%s71 + $0xc0] sm:$0xff]
  %v85 = vld [vmem:[%s71 + $0xd0] sm:$0xff]
  %v86 = vld [vmem:[%s71 + $0xe0] sm:$0xff]
  %v87 = vld [vmem:[%s71 + $0xf0] sm:$0xff]
  %v88 = vmax.f32 %v72, 0.0
  %v89 = vmax.f32 %v73, 0.0
  %v90 = vmax.f32 %v74, 0.0
  %v91 = vmax.f32 %v75, 0.0
  %v92 = vmax.f32 %v76, 0.0
  %v93 = vmax.f32 %v77, 0.0
  %v94 = vmax.f32 %v78, 0.0
  %v95 = vmax.f32 %v79, 0.0
  %v96 = vmax.f32 %v80, 0.0
  %v97 = vmax.f32 %v81, 0.0
  %v98 = vmax.f32 %v82, 0.0
  %v99 = vmax.f32 %v83, 0.0
  %v100 = vmax.f32 %v84, 0.0
  %v101 = vmax.f32 %v85, 0.0
  %v102 = vmax.f32 %v86, 0.0
  %v103 = vmax.f32 %v87, 0.0
  %v104 = vld [vmem:[%s1] sm:$0xf]
  %vm105 = vcmask 31744
  %v107 = vsel %vm105, %v55, 0
  %v110 = vsel %vm105, %v56, 0
  %v113 = vsel %vm105, %v57, 0
  %v116 = vsel %vm105, %v58, 0
  %v119 = vsel %vm105, %v59, 0
  %v122 = vsel %vm105, %v60, 0
  %v125 = vsel %vm105, %v61, 0
  %v128 = vsel %vm105, %v62, 0
  %v131 = vsel %vm105, %v63, 0
  %v134 = vsel %vm105, %v64, 0
  %v137 = vsel %vm105, %v65, 0
  %v140 = vsel %vm105, %v66, 0
  %v143 = vsel %vm105, %v67, 0
  %v146 = vsel %vm105, %v68, 0
  %v149 = vsel %vm105, %v69, 0
  %v152 = vsel %vm105, %v70, 0
  %vm154 = vcmask 1043456
  %v156 = vsel %vm154, %v104, 0
  %158 = vmatprep.subr.mxu0 0.0
  %159 = vmatpush1.msra.mxu0 %v156
  %160 = vmatprep.subr.mxu0 0.0
  %161 = vmatpush1.msra.mxu0 0.0
  %162 = vmatprep.subr.mxu0 0.0
  %163 = vmatpush1.msra.mxu0 0.0
  %164 = vmatprep.subr.mxu0 0.0
  %165 = vmatpush1.msra.mxu0 0.0
  %166 = vmatprep.subr.mxu0 0.0
  %167 = vmatpush1.msra.mxu0 0.0
  %168 = vmatprep.subr.mxu0 0.0
  %169 = vmatpush1.msra.mxu0 0.0
  %170 = vmatprep.subr.mxu0 0.0
  %171 = vmatpush1.msra.mxu0 0.0
  %172 = vmatprep.subr.mxu0 0.0
  %173 = vmatpush1.msra.mxu0 0.0
  %174 = vmatprep.subr.mxu0 0.0
  %175 = vmatpush1.msra.mxu0 0.0
  %176 = vmatprep.subr.mxu0 0.0
  %177 = vmatpush1.msra.mxu0 0.0
  %178 = vmatprep.subr.mxu0 0.0
  %179 = vmatpush1.msra.mxu0 0.0
  %180 = vmatprep.subr.mxu0 0.0
  %181 = vmatpush1.msra.mxu0 0.0
  %182 = vmatprep.subr.mxu0 0.0
  %183 = vmatpush1.msra.mxu0 0.0
  %184 = vmatprep.subr.mxu0 0.0
  %185 = vmatpush1.msra.mxu0 0.0
  %186 = vmatprep.subr.mxu0 0.0
  %187 = vmatpush1.msra.mxu0 0.0
  %188 = vmatprep.subr.mxu0 0.0
  %189 = vmatpush1.msra.mxu0 0.0
  %190 = vmatprep.subr.mxu0 0.0
  %191 = vmatpush1.msra.mxu0 0.0
  %192 = vmatprep.subr.mxu0 0.0
  %193 = vmatpush1.msra.mxu0 0.0
  %194 = vmatprep.subr.mxu0 0.0
  %195 = vmatpush1.msra.mxu0 0.0
  %196 = vmatprep.subr.mxu0 0.0
  %197 = vmatpush1.msra.mxu0 0.0
  %198 = vmatprep.subr.mxu0 0.0
  %199 = vmatpush1.msra.mxu0 0.0
  %200 = vmatprep.subr.mxu0 0.0
  %201 = vmatpush1.msra.mxu0 0.0
  %202 = vmatprep.subr.mxu0 0.0
  %203 = vmatpush1.msra.mxu0 0.0
  %204 = vmatprep.subr.mxu0 0.0
  %205 = vmatpush1.msra.mxu0 0.0
  %206 = vmatprep.subr.mxu0 0.0
  %207 = vmatpush1.msra.mxu0 0.0
  %208 = vmatprep.subr.mxu0 0.0
  %209 = vmatpush1.msra.mxu0 0.0
  %210 = vmatprep.subr.mxu0 0.0
  %211 = vmatpush1.msra.mxu0 0.0
  %212 = vmatprep.subr.mxu0 0.0
  %213 = vmatpush1.msra.mxu0 0.0
  %214 = vmatprep.subr.mxu0 0.0
  %215 = vmatpush1.msra.mxu0 0.0
  %216 = vmatprep.subr.mxu0 0.0
  %217 = vmatpush1.msra.mxu0 0.0
  %218 = vmatprep.subr.mxu0 0.0
  %219 = vmatpush1.msra.mxu0 0.0
  %220 = vmatprep.subr.mxu0 0.0
  %221 = vmatpush1.msra.mxu0 0.0
  %222 = vmatprep.mubr.f32.mxu0 0.0
  %223 = vmatmul.mubr.f32.gmra.mrb[0].mxu0 %v107
  %v224 = vpop.f32.mrb[0].mxu0
  %v225 = vadd.f32 0.0, %v224
  %v226 = vpop.f32.mrb[0].mxu0
  %227 = vmatprep.mubr.f32.mxu0 0.0
  %228 = vmatmul.mubr.f32.gmra.mrb[0].mxu0 %v110
  %v229 = vpop.f32.mrb[0].mxu0
  %v230 = vadd.f32 0.0, %v229
  %v231 = vpop.f32.mrb[0].mxu0
  %232 = vmatprep.mubr.f32.mxu0 0.0
  %233 = vmatmul.mubr.f32.gmra.mrb[0].mxu0 %v113
  %v234 = vpop.f32.mrb[0].mxu0
  %v235 = vadd.f32 0.0, %v234
  %v236 = vpop.f32.mrb[0].mxu0
  %237 = vmatprep.mubr.f32.mxu0 0.0
  %238 = vmatmul.mubr.f32.gmra.mrb[0].mxu0 %v116
  %v239 = vpop.f32.mrb[0].mxu0
  %v240 = vadd.f32 0.0, %v239
  %v241 = vpop.f32.mrb[0].mxu0
  %242 = vmatprep.mubr.f32.mxu0 0.0
  %243 = vmatmul.mubr.f32.gmra.mrb[0].mxu0 %v119
  %v244 = vpop.f32.mrb[0].mxu0
  %v245 = vadd.f32 0.0, %v244
  %v246 = vpop.f32.mrb[0].mxu0
  %247 = vmatprep.mubr.f32.mxu0 0.0
  %248 = vmatmul.mubr.f32.gmra.mrb[0].mxu0 %v122
  %v249 = vpop.f32.mrb[0].mxu0
  %v250 = vadd.f32 0.0, %v249
  %v251 = vpop.f32.mrb[0].mxu0
  %252 = vmatprep.mubr.f32.mxu0 0.0
  %253 = vmatmul.mubr.f32.gmra.mrb[0].mxu0 %v125
  %v254 = vpop.f32.mrb[0].mxu0
  %v255 = vadd.f32 0.0, %v254
  %v256 = vpop.f32.mrb[0].mxu0
  %257 = vmatprep.mubr.f32.mxu0 0.0
  %258 = vmatmul.mubr.f32.gmra.mrb[0].mxu0 %v128
  %v259 = vpop.f32.mrb[0].mxu0
  %v260 = vadd.f32 0.0, %v259
  %v261 = vpop.f32.mrb[0].mxu0
  %262 = vmatprep.mubr.f32.mxu0 0.0
  %263 = vmatmul.mubr.f32.gmra.mrb[0].mxu0 %v131
  %v264 = vpop.f32.mrb[0].mxu0
  %v265 = vadd.f32 0.0, %v264
  %v266 = vpop.f32.mrb[0].mxu0
  %267 = vmatprep.mubr.f32.mxu0 0.0
  %268 = vmatmul.mubr.f32.gmra.mrb[0].mxu0 %v134
  %v269 = vpop.f32.mrb[0].mxu0
  %v270 = vadd.f32 0.0, %v269
  %v271 = vpop.f32.mrb[0].mxu0
  %272 = vmatprep.mubr.f32.mxu0 0.0
  %273 = vmatmul.mubr.f32.gmra.mrb[0].mxu0 %v137
  %v274 = vpop.f32.mrb[0].mxu0
  %v275 = vadd.f32 0.0, %v274
  %v276 = vpop.f32.mrb[0].mxu0
  %277 = vmatprep.mubr.f32.mxu0 0.0
  %278 = vmatmul.mubr.f32.gmra.mrb[0].mxu0 %v140
  %v279 = vpop.f32.mrb[0].mxu0
  %v280 = vadd.f32 0.0, %v279
  %v281 = vpop.f32.mrb[0].mxu0
  %282 = vmatprep.mubr.f32.mxu0 0.0
  %283 = vmatmul.mubr.f32.gmra.mrb[0].mxu0 %v143
  %v284 = vpop.f32.mrb[0].mxu0
  %v285 = vadd.f32 0.0, %v284
  %v286 = vpop.f32.mrb[0].mxu0
  %287 = vmatprep.mubr.f32.mxu0 0.0
  %288 = vmatmul.mubr.f32.gmra.mrb[0].mxu0 %v146
  %v289 = vpop.f32.mrb[0].mxu0
  %v290 = vadd.f32 0.0, %v289
  %v291 = vpop.f32.mrb[0].mxu0
  %292 = vmatprep.mubr.f32.mxu0 0.0
  %293 = vmatmul.mubr.f32.gmra.mrb[0].mxu0 %v149
  %v294 = vpop.f32.mrb[0].mxu0
  %v295 = vadd.f32 0.0, %v294
  %v296 = vpop.f32.mrb[0].mxu0
  %297 = vmatprep.mubr.f32.mxu0 0.0
  %298 = vmatmul.mubr.f32.gmra.mrb[0].mxu0 %v152
  %v299 = vpop.f32.mrb[0].mxu0
  %v300 = vadd.f32 0.0, %v299
  %v301 = vpop.f32.mrb[0].mxu0
  %302 = vdwg.mxu0
  %v303 = vld [vmem:[%s2] sm:$0xf]
  %320 = vrot.lane.b32.xlu0 %v88, 124
  %v321 = vpop.permute.xlu0 %320
  %322 = vrot.lane.b32.xlu0 %v89, 124
  %v323 = vpop.permute.xlu0 %322
  %324 = vrot.lane.b32.xlu0 %v90, 124
  %v325 = vpop.permute.xlu0 %324
  %326 = vrot.lane.b32.xlu0 %v91, 124
  %v327 = vpop.permute.xlu0 %326
  %328 = vrot.lane.b32.xlu0 %v92, 124
  %v329 = vpop.permute.xlu0 %328
  %330 = vrot.lane.b32.xlu0 %v93, 124
  %v331 = vpop.permute.xlu0 %330
  %332 = vrot.lane.b32.xlu0 %v94, 124
  %v333 = vpop.permute.xlu0 %332
  %334 = vrot.lane.b32.xlu0 %v95, 124
  %v335 = vpop.permute.xlu0 %334
  %336 = vrot.lane.b32.xlu0 %v96, 124
  %v337 = vpop.permute.xlu0 %336
  %338 = vrot.lane.b32.xlu0 %v97, 124
  %v339 = vpop.permute.xlu0 %338
  %340 = vrot.lane.b32.xlu0 %v98, 124
  %v341 = vpop.permute.xlu0 %340
  %342 = vrot.lane.b32.xlu0 %v99, 124
  %v343 = vpop.permute.xlu0 %342
  %344 = vrot.lane.b32.xlu0 %v100, 124
  %v345 = vpop.permute.xlu0 %344
  %346 = vrot.lane.b32.xlu0 %v101, 124
  %v347 = vpop.permute.xlu0 %346
  %348 = vrot.lane.b32.xlu0 %v102, 124
  %v349 = vpop.permute.xlu0 %348
  %350 = vrot.lane.b32.xlu0 %v103, 124
  %v351 = vpop.permute.xlu0 %350
  %v352 = vsel %vm105, %v321, 0
  %v354 = vsel %vm105, %v323, 0
  %v356 = vsel %vm105, %v325, 0
  %v358 = vsel %vm105, %v327, 0
  %v360 = vsel %vm105, %v329, 0
  %v362 = vsel %vm105, %v331, 0
  %v364 = vsel %vm105, %v333, 0
  %v366 = vsel %vm105, %v335, 0
  %v368 = vsel %vm105, %v337, 0
  %v370 = vsel %vm105, %v339, 0
  %v372 = vsel %vm105, %v341, 0
  %v374 = vsel %vm105, %v343, 0
  %v376 = vsel %vm105, %v345, 0
  %v378 = vsel %vm105, %v347, 0
  %v380 = vsel %vm105, %v349, 0
  %v382 = vsel %vm105, %v351, 0
  %v385 = vsel %vm154, %v303, 0
  %387 = vmatprep.subr.mxu0 0.0
  %388 = vmatpush1.msra.mxu0 %v385
  %389 = vmatprep.subr.mxu0 0.0
  %390 = vmatpush1.msra.mxu0 0.0
  %391 = vmatprep.subr.mxu0 0.0
  %392 = vmatpush1.msra.mxu0 0.0
  %393 = vmatprep.subr.mxu0 0.0
  %394 = vmatpush1.msra.mxu0 0.0
  %395 = vmatprep.subr.mxu0 0.0
  %396 = vmatpush1.msra.mxu0 0.0
  %397 = vmatprep.subr.mxu0 0.0
  %398 = vmatpush1.msra.mxu0 0.0
  %399 = vmatprep.subr.mxu0 0.0
  %400 = vmatpush1.msra.mxu0 0.0
  %401 = vmatprep.subr.mxu0 0.0
  %402 = vmatpush1.msra.mxu0 0.0
  %403 = vmatprep.subr.mxu0 0.0
  %404 = vmatpush1.msra.mxu0 0.0
  %405 = vmatprep.subr.mxu0 0.0
  %406 = vmatpush1.msra.mxu0 0.0
  %407 = vmatprep.subr.mxu0 0.0
  %408 = vmatpush1.msra.mxu0 0.0
  %409 = vmatprep.subr.mxu0 0.0
  %410 = vmatpush1.msra.mxu0 0.0
  %411 = vmatprep.subr.mxu0 0.0
  %412 = vmatpush1.msra.mxu0 0.0
  %413 = vmatprep.subr.mxu0 0.0
  %414 = vmatpush1.msra.mxu0 0.0
  %415 = vmatprep.subr.mxu0 0.0
  %416 = vmatpush1.msra.mxu0 0.0
  %417 = vmatprep.subr.mxu0 0.0
  %418 = vmatpush1.msra.mxu0 0.0
  %419 = vmatprep.subr.mxu0 0.0
  %420 = vmatpush1.msra.mxu0 0.0
  %421 = vmatprep.subr.mxu0 0.0
  %422 = vmatpush1.msra.mxu0 0.0
  %423 = vmatprep.subr.mxu0 0.0
  %424 = vmatpush1.msra.mxu0 0.0
  %425 = vmatprep.subr.mxu0 0.0
  %426 = vmatpush1.msra.mxu0 0.0
  %427 = vmatprep.subr.mxu0 0.0
  %428 = vmatpush1.msra.mxu0 0.0
  %429 = vmatprep.subr.mxu0 0.0
  %430 = vmatpush1.msra.mxu0 0.0
  %431 = vmatprep.subr.mxu0 0.0
  %432 = vmatpush1.msra.mxu0 0.0
  %433 = vmatprep.subr.mxu0 0.0
  %434 = vmatpush1.msra.mxu0 0.0
  %435 = vmatprep.subr.mxu0 0.0
  %436 = vmatpush1.msra.mxu0 0.0
  %437 = vmatprep.subr.mxu0 0.0
  %438 = vmatpush1.msra.mxu0 0.0
  %439 = vmatprep.subr.mxu0 0.0
  %440 = vmatpush1.msra.mxu0 0.0
  %441 = vmatprep.subr.mxu0 0.0
  %442 = vmatpush1.msra.mxu0 0.0
  %443 = vmatprep.subr.mxu0 0.0
  %444 = vmatpush1.msra.mxu0 0.0
  %445 = vmatprep.subr.mxu0 0.0
  %446 = vmatpush1.msra.mxu0 0.0
  %447 = vmatprep.subr.mxu0 0.0
  %448 = vmatpush1.msra.mxu0 0.0
  %449 = vmatprep.subr.mxu0 0.0
  %450 = vmatpush1.msra.mxu0 0.0
  %451 = vmatprep.mubr.f32.mxu0 0.0
  %452 = vmatmul.mubr.f32.gmra.mrb[0].mxu0 %v352
  %v453 = vpop.f32.mrb[0].mxu0
  %v454 = vadd.f32 0.0, %v453
  %v455 = vpop.f32.mrb[0].mxu0
  %456 = vmatprep.mubr.f32.mxu0 0.0
  %457 = vmatmul.mubr.f32.gmra.mrb[0].mxu0 %v354
  %v458 = vpop.f32.mrb[0].mxu0
  %v459 = vadd.f32 0.0, %v458
  %v460 = vpop.f32.mrb[0].mxu0
  %461 = vmatprep.mubr.f32.mxu0 0.0
  %462 = vmatmul.mubr.f32.gmra.mrb[0].mxu0 %v356
  %v463 = vpop.f32.mrb[0].mxu0
  %v464 = vadd.f32 0.0, %v463
  %v465 = vpop.f32.mrb[0].mxu0
  %466 = vmatprep.mubr.f32.mxu0 0.0
  %467 = vmatmul.mubr.f32.gmra.mrb[0].mxu0 %v358
  %v468 = vpop.f32.mrb[0].mxu0
  %v469 = vadd.f32 0.0, %v468
  %v470 = vpop.f32.mrb[0].mxu0
  %471 = vmatprep.mubr.f32.mxu0 0.0
  %472 = vmatmul.mubr.f32.gmra.mrb[0].mxu0 %v360
  %v473 = vpop.f32.mrb[0].mxu0
  %v474 = vadd.f32 0.0, %v473
  %v475 = vpop.f32.mrb[0].mxu0
  %476 = vmatprep.mubr.f32.mxu0 0.0
  %477 = vmatmul.mubr.f32.gmra.mrb[0].mxu0 %v362
  %v478 = vpop.f32.mrb[0].mxu0
  %v479 = vadd.f32 0.0, %v478
  %v480 = vpop.f32.mrb[0].mxu0
  %481 = vmatprep.mubr.f32.mxu0 0.0
  %482 = vmatmul.mubr.f32.gmra.mrb[0].mxu0 %v364
  %v483 = vpop.f32.mrb[0].mxu0
  %v484 = vadd.f32 0.0, %v483
  %v485 = vpop.f32.mrb[0].mxu0
  %486 = vmatprep.mubr.f32.mxu0 0.0
  %487 = vmatmul.mubr.f32.gmra.mrb[0].mxu0 %v366
  %v488 = vpop.f32.mrb[0].mxu0
  %v489 = vadd.f32 0.0, %v488
  %v490 = vpop.f32.mrb[0].mxu0
  %491 = vmatprep.mubr.f32.mxu0 0.0
  %492 = vmatmul.mubr.f32.gmra.mrb[0].mxu0 %v368
  %v493 = vpop.f32.mrb[0].mxu0
  %v494 = vadd.f32 0.0, %v493
  %v495 = vpop.f32.mrb[0].mxu0
  %496 = vmatprep.mubr.f32.mxu0 0.0
  %497 = vmatmul.mubr.f32.gmra.mrb[0].mxu0 %v370
  %v498 = vpop.f32.mrb[0].mxu0
  %v499 = vadd.f32 0.0, %v498
  %v500 = vpop.f32.mrb[0].mxu0
  %501 = vmatprep.mubr.f32.mxu0 0.0
  %502 = vmatmul.mubr.f32.gmra.mrb[0].mxu0 %v372
  %v503 = vpop.f32.mrb[0].mxu0
  %v504 = vadd.f32 0.0, %v503
  %v505 = vpop.f32.mrb[0].mxu0
  %506 = vmatprep.mubr.f32.mxu0 0.0
  %507 = vmatmul.mubr.f32.gmra.mrb[0].mxu0 %v374
  %v508 = vpop.f32.mrb[0].mxu0
  %v509 = vadd.f32 0.0, %v508
  %v510 = vpop.f32.mrb[0].mxu0
  %511 = vmatprep.mubr.f32.mxu0 0.0
  %512 = vmatmul.mubr.f32.gmra.mrb[0].mxu0 %v376
  %v513 = vpop.f32.mrb[0].mxu0
  %v514 = vadd.f32 0.0, %v513
  %v515 = vpop.f32.mrb[0].mxu0
  %516 = vmatprep.mubr.f32.mxu0 0.0
  %517 = vmatmul.mubr.f32.gmra.mrb[0].mxu0 %v378
  %v518 = vpop.f32.mrb[0].mxu0
  %v519 = vadd.f32 0.0, %v518
  %v520 = vpop.f32.mrb[0].mxu0
  %521 = vmatprep.mubr.f32.mxu0 0.0
  %522 = vmatmul.mubr.f32.gmra.mrb[0].mxu0 %v380
  %v523 = vpop.f32.mrb[0].mxu0
  %v524 = vadd.f32 0.0, %v523
  %v525 = vpop.f32.mrb[0].mxu0
  %526 = vmatprep.mubr.f32.mxu0 0.0
  %527 = vmatmul.mubr.f32.gmra.mrb[0].mxu0 %v382
  %v528 = vpop.f32.mrb[0].mxu0
  %v529 = vadd.f32 0.0, %v528
  %v530 = vpop.f32.mrb[0].mxu0
  %531 = vdwg.mxu0
  %p532 = scmp.eq.s32.totalorder 0, 0
  // Predicated region
  $region14: #{factorized_reduce.2} parent=0 // pred_check
    %p533 = pneg %p532
  $region15: #{factorized_reduce.2} parent=0 // pred_check_branch
    %535 = sbr.rel (%p533) target = $region17
  $region16: #{factorized_reduce.2} parent=0 // pred_region
    %v536 = vsel %vm105, %v225, 0.0
    %v537 = vsel %vm105, %v230, 0.0
    %v538 = vadd.f32 %v536, %v537
    %v539 = vsel %vm105, %v235, 0.0
    %v540 = vadd.f32 %v538, %v539
    %v541 = vsel %vm105, %v240, 0.0
    %v542 = vadd.f32 %v540, %v541
    %v543 = vsel %vm105, %v245, 0.0
    %v544 = vadd.f32 %v542, %v543
    %v545 = vsel %vm105, %v250, 0.0
    %v546 = vadd.f32 %v544, %v545
    %v547 = vsel %vm105, %v255, 0.0
    %v548 = vadd.f32 %v546, %v547
    %v549 = vsel %vm105, %v260, 0.0
    %v550 = vadd.f32 %v548, %v549
    %v551 = vsel %vm105, %v265, 0.0
    %v552 = vadd.f32 %v550, %v551
    %v553 = vsel %vm105, %v270, 0.0
    %v554 = vadd.f32 %v552, %v553
    %v555 = vsel %vm105, %v275, 0.0
    %v556 = vadd.f32 %v554, %v555
    %v557 = vsel %vm105, %v280, 0.0
    %v558 = vadd.f32 %v556, %v557
    %v559 = vsel %vm105, %v285, 0.0
    %v560 = vadd.f32 %v558, %v559
    %v561 = vsel %vm105, %v290, 0.0
    %v562 = vadd.f32 %v560, %v561
    %v563 = vsel %vm105, %v295, 0.0
    %v564 = vadd.f32 %v562, %v563
    %v565 = vsel %vm105, %v300, 0.0
    %v566 = vadd.f32 %v564, %v565
    %v567 = vrot.slane %v566, 4
    %v568 = vadd.f32 %v566, %v567
    %v569 = vrot.slane %v568, 2
    %v570 = vadd.f32 %v568, %v569
    %v571 = vrot.slane %v570, 1
    %v572 = vadd.f32 %v570, %v571
    %v573 = vmul.f32 %v572, 0.0078125
    %vm574 = vcmask 24576
    %575 = vst.msk [vmem:[%s3] sm:$0x1] %vm574, %v573
    %v576 = vsel %vm105, %v454, 0.0
    %v577 = vsel %vm105, %v459, 0.0
    %v578 = vadd.f32 %v576, %v577
    %v579 = vsel %vm105, %v464, 0.0
    %v580 = vadd.f32 %v578, %v579
    %v581 = vsel %vm105, %v469, 0.0
    %v582 = vadd.f32 %v580, %v581
    %v583 = vsel %vm105, %v474, 0.0
    %v584 = vadd.f32 %v582, %v583
    %v585 = vsel %vm105, %v479, 0.0
    %v586 = vadd.f32 %v584, %v585
    %v587 = vsel %vm105, %v484, 0.0
    %v588 = vadd.f32 %v586, %v587
    %v589 = vsel %vm105, %v489, 0.0
    %v590 = vadd.f32 %v588, %v589
    %v591 = vsel %vm105, %v494, 0.0
    %v592 = vadd.f32 %v590, %v591
    %v593 = vsel %vm105, %v499, 0.0
    %v594 = vadd.f32 %v592, %v593
    %v595 = vsel %vm105, %v504, 0.0
    %v596 = vadd.f32 %v594, %v595
    %v597 = vsel %vm105, %v509, 0.0
    %v598 = vadd.f32 %v596, %v597
    %v599 = vsel %vm105, %v514, 0.0
    %v600 = vadd.f32 %v598, %v599
    %v601 = vsel %vm105, %v519, 0.0
    %v602 = vadd.f32 %v600, %v601
    %v603 = vsel %vm105, %v524, 0.0
    %v604 = vadd.f32 %v602, %v603
    %v605 = vsel %vm105, %v529, 0.0
    %v606 = vadd.f32 %v604, %v605
    %v607 = vrot.slane %v606, 4
    %v608 = vadd.f32 %v606, %v607
    %v609 = vrot.slane %v608, 2
    %v610 = vadd.f32 %v608, %v609
    %v611 = vrot.slane %v610, 1
    %v612 = vadd.f32 %v610, %v611
    %v613 = vmul.f32 %v612, 0.0078125
    %614 = vst.msk [vmem:[%s3 + $0x1] sm:$0x1] %vm574, %v613
    %vm615 = vcmask 27648
    %616 = vst.msk [vmem:[%s3 + $0x2] sm:$0xf] %vm615, 0.0
  $region17: #{factorized_reduce.2} parent=0 // pred_fallthru
    _
  %v617 = vld [vmem:[%s3] sm:$0x1]
  %v618 = vlaneseq
  %v619 = vshrl.u32 %v618, 7
  %v620 = vsub.s32 0, %v619
  %v621 = vrot.slane %v617, %v620
  %v622 = vsub.f32 %v225, %v621
  %v623 = vsub.f32 %v230, %v621
  %v624 = vsub.f32 %v235, %v621
  %v625 = vsub.f32 %v240, %v621
  %v626 = vsub.f32 %v245, %v621
  %v627 = vsub.f32 %v250, %v621
  %v628 = vsub.f32 %v255, %v621
  %v629 = vsub.f32 %v260, %v621
  %v630 = vsub.f32 %v265, %v621
  %v631 = vsub.f32 %v270, %v621
  %v632 = vsub.f32 %v275, %v621
  %v633 = vsub.f32 %v280, %v621
  %v634 = vsub.f32 %v285, %v621
  %v635 = vsub.f32 %v290, %v621
  %v636 = vsub.f32 %v295, %v621
  %v637 = vsub.f32 %v300, %v621
  %v638 = vld [vmem:[%s3 + $0x1] sm:$0x1]
  %v639 = vlaneseq
  %v640 = vshrl.u32 %v639, 7
  %v641 = vsub.s32 0, %v640
  %v642 = vrot.slane %v638, %v641
  %v643 = vsub.f32 %v454, %v642
  %v644 = vsub.f32 %v459, %v642
  %v645 = vsub.f32 %v464, %v642
  %v646 = vsub.f32 %v469, %v642
  %v647 = vsub.f32 %v474, %v642
  %v648 = vsub.f32 %v479, %v642
  %v649 = vsub.f32 %v484, %v642
  %v650 = vsub.f32 %v489, %v642
  %v651 = vsub.f32 %v494, %v642
  %v652 = vsub.f32 %v499, %v642
  %v653 = vsub.f32 %v504, %v642
  %v654 = vsub.f32 %v509, %v642
  %v655 = vsub.f32 %v514, %v642
  %v656 = vsub.f32 %v519, %v642
  %v657 = vsub.f32 %v524, %v642
  %v658 = vsub.f32 %v529, %v642
  %v659 = vld [vmem:[%s3 + $0x2] sm:$0x1]
  %v660 = vsel %vm105, %v622, 0.0
  %v661 = vsel %vm105, %v623, 0.0
  %v662 = vadd.f32 %v660, %v661
  %v663 = vsel %vm105, %v624, 0.0
  %v664 = vadd.f32 %v662, %v663
  %v665 = vsel %vm105, %v625, 0.0
  %v666 = vadd.f32 %v664, %v665
  %v667 = vsel %vm105, %v626, 0.0
  %v668 = vadd.f32 %v666, %v667
  %v669 = vsel %vm105, %v627, 0.0
  %v670 = vadd.f32 %v668, %v669
  %v671 = vsel %vm105, %v628, 0.0
  %v672 = vadd.f32 %v670, %v671
  %v673 = vsel %vm105, %v629, 0.0
  %v674 = vadd.f32 %v672, %v673
  %v675 = vsel %vm105, %v630, 0.0
  %v676 = vadd.f32 %v674, %v675
  %v677 = vsel %vm105, %v631, 0.0
  %v678 = vadd.f32 %v676, %v677
  %v679 = vsel %vm105, %v632, 0.0
  %v680 = vadd.f32 %v678, %v679
  %v681 = vsel %vm105, %v633, 0.0
  %v682 = vadd.f32 %v680, %v681
  %v683 = vsel %vm105, %v634, 0.0
  %v684 = vadd.f32 %v682, %v683
  %v685 = vsel %vm105, %v635, 0.0
  %v686 = vadd.f32 %v684, %v685
  %v687 = vsel %vm105, %v636, 0.0
  %v688 = vadd.f32 %v686, %v687
  %v689 = vsel %vm105, %v637, 0.0
  %v690 = vadd.f32 %v688, %v689
  %v691 = vrot.slane %v690, 4
  %v692 = vadd.f32 %v690, %v691
  %v693 = vrot.slane %v692, 2
  %v694 = vadd.f32 %v692, %v693
  %v695 = vrot.slane %v694, 1
  %v696 = vadd.f32 %v694, %v695
  %v697 = vadd.f32 %v659, %v696
  %vm698 = vcmask 24576
  %699 = vst.msk [vmem:[%s3 + $0x2] sm:$0x1] %vm698, %v697
  %v700 = vld [vmem:[%s3 + $0x3] sm:$0x1]
  %v701 = vsel %vm105, %v643, 0.0
  %v702 = vsel %vm105, %v644, 0.0
  %v703 = vadd.f32 %v701, %v702
  %v704 = vsel %vm105, %v645, 0.0
  %v705 = vadd.f32 %v703, %v704
  %v706 = vsel %vm105, %v646, 0.0
  %v707 = vadd.f32 %v705, %v706
  %v708 = vsel %vm105, %v647, 0.0
  %v709 = vadd.f32 %v707, %v708
  %v710 = vsel %vm105, %v648, 0.0
  %v711 = vadd.f32 %v709, %v710
  %v712 = vsel %vm105, %v649, 0.0
  %v713 = vadd.f32 %v711, %v712
  %v714 = vsel %vm105, %v650, 0.0
  %v715 = vadd.f32 %v713, %v714
  %v716 = vsel %vm105, %v651, 0.0
  %v717 = vadd.f32 %v715, %v716
  %v718 = vsel %vm105, %v652, 0.0
  %v719 = vadd.f32 %v717, %v718
  %v720 = vsel %vm105, %v653, 0.0
  %v721 = vadd.f32 %v719, %v720
  %v722 = vsel %vm105, %v654, 0.0
  %v723 = vadd.f32 %v721, %v722
  %v724 = vsel %vm105, %v655, 0.0
  %v725 = vadd.f32 %v723, %v724
  %v726 = vsel %vm105, %v656, 0.0
  %v727 = vadd.f32 %v725, %v726
  %v728 = vsel %vm105, %v657, 0.0
  %v729 = vadd.f32 %v727, %v728
  %v730 = vsel %vm105, %v658, 0.0
  %v731 = vadd.f32 %v729, %v730
  %v732 = vrot.slane %v731, 4
  %v733 = vadd.f32 %v731, %v732
  %v734 = vrot.slane %v733, 2
  %v735 = vadd.f32 %v733, %v734
  %v736 = vrot.slane %v735, 1
  %v737 = vadd.f32 %v735, %v736
  %v738 = vadd.f32 %v700, %v737
  %739 = vst.msk [vmem:[%s3 + $0x3] sm:$0x1] %vm698, %v738
  %v740 = vld [vmem:[%s3 + $0x4] sm:$0x1]
  %v741 = vmul.f32 %v622, %v622
  %v742 = vmul.f32 %v623, %v623
  %v743 = vmul.f32 %v624, %v624
  %v744 = vmul.f32 %v625, %v625
  %v745 = vmul.f32 %v626, %v626
  %v746 = vmul.f32 %v627, %v627
  %v747 = vmul.f32 %v628, %v628
  %v748 = vmul.f32 %v629, %v629
  %v749 = vmul.f32 %v630, %v630
  %v750 = vmul.f32 %v631, %v631
  %v751 = vmul.f32 %v632, %v632
  %v752 = vmul.f32 %v633, %v633
  %v753 = vmul.f32 %v634, %v634
  %v754 = vmul.f32 %v635, %v635
  %v755 = vmul.f32 %v636, %v636
  %v756 = vmul.f32 %v637, %v637
  %v757 = vsel %vm105, %v741, 0.0
  %v758 = vsel %vm105, %v742, 0.0
  %v759 = vadd.f32 %v757, %v758
  %v760 = vsel %vm105, %v743, 0.0
  %v761 = vadd.f32 %v759, %v760
  %v762 = vsel %vm105, %v744, 0.0
  %v763 = vadd.f32 %v761, %v762
  %v764 = vsel %vm105, %v745, 0.0
  %v765 = vadd.f32 %v763, %v764
  %v766 = vsel %vm105, %v746, 0.0
  %v767 = vadd.f32 %v765, %v766
  %v768 = vsel %vm105, %v747, 0.0
  %v769 = vadd.f32 %v767, %v768
  %v770 = vsel %vm105, %v748, 0.0
  %v771 = vadd.f32 %v769, %v770
  %v772 = vsel %vm105, %v749, 0.0
  %v773 = vadd.f32 %v771, %v772
  %v774 = vsel %vm105, %v750, 0.0
  %v775 = vadd.f32 %v773, %v774
  %v776 = vsel %vm105, %v751, 0.0
  %v777 = vadd.f32 %v775, %v776
  %v778 = vsel %vm105, %v752, 0.0
  %v779 = vadd.f32 %v777, %v778
  %v780 = vsel %vm105, %v753, 0.0
  %v781 = vadd.f32 %v779, %v780
  %v782 = vsel %vm105, %v754, 0.0
  %v783 = vadd.f32 %v781, %v782
  %v784 = vsel %vm105, %v755, 0.0
  %v785 = vadd.f32 %v783, %v784
  %v786 = vsel %vm105, %v756, 0.0
  %v787 = vadd.f32 %v785, %v786
  %v788 = vrot.slane %v787, 4
  %v789 = vadd.f32 %v787, %v788
  %v790 = vrot.slane %v789, 2
  %v791 = vadd.f32 %v789, %v790
  %v792 = vrot.slane %v791, 1
  %v793 = vadd.f32 %v791, %v792
  %v794 = vadd.f32 %v740, %v793
  %795 = vst.msk [vmem:[%s3 + $0x4] sm:$0x1] %vm698, %v794
  %v796 = vld [vmem:[%s3 + $0x5] sm:$0x1]
  %v797 = vmul.f32 %v643, %v643
  %v798 = vmul.f32 %v644, %v644
  %v799 = vmul.f32 %v645, %v645
  %v800 = vmul.f32 %v646, %v646
  %v801 = vmul.f32 %v647, %v647
  %v802 = vmul.f32 %v648, %v648
  %v803 = vmul.f32 %v649, %v649
  %v804 = vmul.f32 %v650, %v650
  %v805 = vmul.f32 %v651, %v651
  %v806 = vmul.f32 %v652, %v652
  %v807 = vmul.f32 %v653, %v653
  %v808 = vmul.f32 %v654, %v654
  %v809 = vmul.f32 %v655, %v655
  %v810 = vmul.f32 %v656, %v656
  %v811 = vmul.f32 %v657, %v657
  %v812 = vmul.f32 %v658, %v658
  %v813 = vsel %vm105, %v797, 0.0
  %v814 = vsel %vm105, %v798, 0.0
  %v815 = vadd.f32 %v813, %v814
  %v816 = vsel %vm105, %v799, 0.0
  %v817 = vadd.f32 %v815, %v816
  %v818 = vsel %vm105, %v800, 0.0
  %v819 = vadd.f32 %v817, %v818
  %v820 = vsel %vm105, %v801, 0.0
  %v821 = vadd.f32 %v819, %v820
  %v822 = vsel %vm105, %v802, 0.0
  %v823 = vadd.f32 %v821, %v822
  %v824 = vsel %vm105, %v803, 0.0
  %v825 = vadd.f32 %v823, %v824
  %v826 = vsel %vm105, %v804, 0.0
  %v827 = vadd.f32 %v825, %v826
  %v828 = vsel %vm105, %v805, 0.0
  %v829 = vadd.f32 %v827, %v828
  %v830 = vsel %vm105, %v806, 0.0
  %v831 = vadd.f32 %v829, %v830
  %v832 = vsel %vm105, %v807, 0.0
  %v833 = vadd.f32 %v831, %v832
  %v834 = vsel %vm105, %v808, 0.0
  %v835 = vadd.f32 %v833, %v834
  %v836 = vsel %vm105, %v809, 0.0
  %v837 = vadd.f32 %v835, %v836
  %v838 = vsel %vm105, %v810, 0.0
  %v839 = vadd.f32 %v837, %v838
  %v840 = vsel %vm105, %v811, 0.0
  %v841 = vadd.f32 %v839, %v840
  %v842 = vsel %vm105, %v812, 0.0
  %v843 = vadd.f32 %v841, %v842
  %v844 = vrot.slane %v843, 4
  %v845 = vadd.f32 %v843, %v844
  %v846 = vrot.slane %v845, 2
  %v847 = vadd.f32 %v845, %v846
  %v848 = vrot.slane %v847, 1
  %v849 = vadd.f32 %v847, %v848
  %v850 = vadd.f32 %v796, %v849
  %851 = vst.msk [vmem:[%s3 + $0x5] sm:$0x1] %vm698, %v850
  // Predicated region
  $region18: #{factorized_reduce.2} parent=0 // pred_check
    _
  $region19: #{factorized_reduce.2} parent=0 // pred_check_branch
    %853 = sbr.rel (0) target = $region21
  $region20: #{factorized_reduce.2} parent=0 // pred_region
    _
  $region21: #{factorized_reduce.2} parent=0 // pred_fallthru
    _
  // Predicated region
  $region22: #{factorized_reduce.2} parent=0 // pred_check
    _
  $region23: #{factorized_reduce.2} parent=0 // pred_check_branch
    %855 = sbr.rel (0) target = $region25
  $region24: #{factorized_reduce.2} parent=0 // pred_region
    _
  $region25: #{factorized_reduce.2} parent=0 // pred_fallthru
    _

// kernel: factorized_reduce.3
$region0: #{factorized_reduce.3}
  #allocation0 [shape = 'u32[]', space=smem, size = 0x4, offset = 0x4, fixed_abs, tag = 'smem constant byte address 0x4 - core index']
  #allocation1 [shape = 'u32[144,128]{1,0:T(1,128)}', space=vmem, size = 0x12000, scoped, tag = 'internal scratch']
  %s0 = inlined_call_operand.vmem [shape: f32[16,2,8,8], index: 0, kind: input, shape index: {}]
  %s1 = inlined_call_operand.vmem [shape: f32[4,4], index: 1, kind: input, shape index: {}]
  %s2 = inlined_call_operand.vmem [shape: f32[4,4], index: 2, kind: input, shape index: {}]
  %s3 = inlined_call_operand.vmem [shape: f32[2,8], index: 3, kind: input, shape index: {}]
  %s4 = inlined_call_operand.vmem [shape: f32[16,8,8], index: 4, kind: output, shape index: {}]
  %s5 = sld [smem:[#allocation0]]
  $region26: #{factorized_reduce.3} parent=0
    _
  %s7 = ssub.s32 1, %s5
  %s8 = scalar_select 0, %s7, %s5
  // Predicated region
  $region2: #{factorized_reduce.3} parent=0 // pred_check
    _
  $region3: #{factorized_reduce.3} parent=0 // pred_check_branch
    %10 = sbr.rel (0) target = $region5
  $region4: #{factorized_reduce.3} parent=0 // pred_region
    _
  $region5: #{factorized_reduce.3} parent=0 // pred_fallthru
    _
  // Predicated region
  $region6: #{factorized_reduce.3} parent=0 // pred_check
    _
  $region7: #{factorized_reduce.3} parent=0 // pred_check_branch
    %12 = sbr.rel (0) target = $region9
  $region8: #{factorized_reduce.3} parent=0 // pred_region
    _
  $region9: #{factorized_reduce.3} parent=0 // pred_fallthru
    _
  // Predicated region
  $region10: #{factorized_reduce.3} parent=0 // pred_check
    _
  $region11: #{factorized_reduce.3} parent=0 // pred_check_branch
    %14 = sbr.rel (0) target = $region13
  $region12: #{factorized_reduce.3} parent=0 // pred_region
    _
  $region13: #{factorized_reduce.3} parent=0 // pred_fallthru
    _
  // Predicated region
  $region14: #{factorized_reduce.3} parent=0 // pred_check
    _
  $region15: #{factorized_reduce.3} parent=0 // pred_check_branch
    %16 = sbr.rel (0) target = $region17
  $region16: #{factorized_reduce.3} parent=0 // pred_region
    _
  $region17: #{factorized_reduce.3} parent=0 // pred_fallthru
    _
  %v17 = vld [vmem:[%s0] sm:$0xff]
  %v18 = vld [vmem:[%s0 + $0x10] sm:$0xff]
  %v19 = vld [vmem:[%s0 + $0x20] sm:$0xff]
  %v20 = vld [vmem:[%s0 + $0x30] sm:$0xff]
  %v21 = vld [vmem:[%s0 + $0x40] sm:$0xff]
  %v22 = vld [vmem:[%s0 + $0x50] sm:$0xff]
  %v23 = vld [vmem:[%s0 + $0x60] sm:$0xff]
  %v24 = vld [vmem:[%s0 + $0x70] sm:$0xff]
  %v25 = vld [vmem:[%s0 + $0x80] sm:$0xff]
  %v26 = vld [vmem:[%s0 + $0x90] sm:$0xff]
  %v27 = vld [vmem:[%s0 + $0xa0] sm:$0xff]
  %v28 = vld [vmem:[%s0 + $0xb0] sm:$0xff]
  %v29 = vld [vmem:[%s0 + $0xc0] sm:$0xff]
  %v30 = vld [vmem:[%s0 + $0xd0] sm:$0xff]
  %v31 = vld [vmem:[%s0 + $0xe0] sm:$0xff]
  %v32 = vld [vmem:[%s0 + $0xf0] sm:$0xff]
  %v33 = vmax.f32 %v17, 0.0
  %v34 = vmax.f32 %v18, 0.0
  %v35 = vmax.f32 %v19, 0.0
  %v36 = vmax.f32 %v20, 0.0
  %v37 = vmax.f32 %v21, 0.0
  %v38 = vmax.f32 %v22, 0.0
  %v39 = vmax.f32 %v23, 0.0
  %v40 = vmax.f32 %v24, 0.0
  %v41 = vmax.f32 %v25, 0.0
  %v42 = vmax.f32 %v26, 0.0
  %v43 = vmax.f32 %v27, 0.0
  %v44 = vmax.f32 %v28, 0.0
  %v45 = vmax.f32 %v29, 0.0
  %v46 = vmax.f32 %v30, 0.0
  %v47 = vmax.f32 %v31, 0.0
  %v48 = vmax.f32 %v32, 0.0
  %s49 = scalar_lea.vmem %s0, 8
  %v50 = vld [vmem:[%s49] sm:$0xff]
  %v51 = vld [vmem:[%s49 + $0x10] sm:$0xff]
  %v52 = vld [vmem:[%s49 + $0x20] sm:$0xff]
  %v53 = vld [vmem:[%s49 + $0x30] sm:$0xff]
  %v54 = vld [vmem:[%s49 + $0x40] sm:$0xff]
  %v55 = vld [vmem:[%s49 + $0x50] sm:$0xff]
  %v56 = vld [vmem:[%s49 + $0x60] sm:$0xff]
  %v57 = vld [vmem:[%s49 + $0x70] sm:$0xff]
  %v58 = vld [vmem:[%s49 + $0x80] sm:$0xff]
  %v59 = vld [vmem:[%s49 + $0x90] sm:$0xff]
  %v60 = vld [vmem:[%s49 + $0xa0] sm:$0xff]
  %v61 = vld [vmem:[%s49 + $0xb0] sm:$0xff]
  %v62 = vld [vmem:[%s49 + $0xc0] sm:$0xff]
  %v63 = vld [vmem:[%s49 + $0xd0] sm:$0xff]
  %v64 = vld [vmem:[%s49 + $0xe0] sm:$0xff]
  %v65 = vld [vmem:[%s49 + $0xf0] sm:$0xff]
  %v66 = vmax.f32 %v50, 0.0
  %v67 = vmax.f32 %v51, 0.0
  %v68 = vmax.f32 %v52, 0.0
  %v69 = vmax.f32 %v53, 0.0
  %v70 = vmax.f32 %v54, 0.0
  %v71 = vmax.f32 %v55, 0.0
  %v72 = vmax.f32 %v56, 0.0
  %v73 = vmax.f32 %v57, 0.0
  %v74 = vmax.f32 %v58, 0.0
  %v75 = vmax.f32 %v59, 0.0
  %v76 = vmax.f32 %v60, 0.0
  %v77 = vmax.f32 %v61, 0.0
  %v78 = vmax.f32 %v62, 0.0
  %v79 = vmax.f32 %v63, 0.0
  %v80 = vmax.f32 %v64, 0.0
  %v81 = vmax.f32 %v65, 0.0
  %v82 = vld [vmem:[%s1] sm:$0xf]
  %vm83 = vcmask 31744
  %v85 = vsel %vm83, %v33, 0
  %v88 = vsel %vm83, %v34, 0
  %v91 = vsel %vm83, %v35, 0
  %v94 = vsel %vm83, %v36, 0
  %v97 = vsel %vm83, %v37, 0
  %v100 = vsel %vm83, %v38, 0
  %v103 = vsel %vm83, %v39, 0
  %v106 = vsel %vm83, %v40, 0
  %v109 = vsel %vm83, %v41, 0
  %v112 = vsel %vm83, %v42, 0
  %v115 = vsel %vm83, %v43, 0
  %v118 = vsel %vm83, %v44, 0
  %v121 = vsel %vm83, %v45, 0
  %v124 = vsel %vm83, %v46, 0
  %v127 = vsel %vm83, %v47, 0
  %v130 = vsel %vm83, %v48, 0
  %vm132 = vcmask 1043456
  %v134 = vsel %vm132, %v82, 0
  %136 = vmatprep.subr.mxu0 0.0
  %137 = vmatpush1.msra.mxu0 %v134
  %138 = vmatprep.subr.mxu0 0.0
  %139 = vmatpush1.msra.mxu0 0.0
  %140 = vmatprep.subr.mxu0 0.0
  %141 = vmatpush1.msra.mxu0 0.0
  %142 = vmatprep.subr.mxu0 0.0
  %143 = vmatpush1.msra.mxu0 0.0
  %144 = vmatprep.subr.mxu0 0.0
  %145 = vmatpush1.msra.mxu0 0.0
  %146 = vmatprep.subr.mxu0 0.0
  %147 = vmatpush1.msra.mxu0 0.0
  %148 = vmatprep.subr.mxu0 0.0
  %149 = vmatpush1.msra.mxu0 0.0
  %150 = vmatprep.subr.mxu0 0.0
  %151 = vmatpush1.msra.mxu0 0.0
  %152 = vmatprep.subr.mxu0 0.0
  %153 = vmatpush1.msra.mxu0 0.0
  %154 = vmatprep.subr.mxu0 0.0
  %155 = vmatpush1.msra.mxu0 0.0
  %156 = vmatprep.subr.mxu0 0.0
  %157 = vmatpush1.msra.mxu0 0.0
  %158 = vmatprep.subr.mxu0 0.0
  %159 = vmatpush1.msra.mxu0 0.0
  %160 = vmatprep.subr.mxu0 0.0
  %161 = vmatpush1.msra.mxu0 0.0
  %162 = vmatprep.subr.mxu0 0.0
  %163 = vmatpush1.msra.mxu0 0.0
  %164 = vmatprep.subr.mxu0 0.0
  %165 = vmatpush1.msra.mxu0 0.0
  %166 = vmatprep.subr.mxu0 0.0
  %167 = vmatpush1.msra.mxu0 0.0
  %168 = vmatprep.subr.mxu0 0.0
  %169 = vmatpush1.msra.mxu0 0.0
  %170 = vmatprep.subr.mxu0 0.0
  %171 = vmatpush1.msra.mxu0 0.0
  %172 = vmatprep.subr.mxu0 0.0
  %173 = vmatpush1.msra.mxu0 0.0
  %174 = vmatprep.subr.mxu0 0.0
  %175 = vmatpush1.msra.mxu0 0.0
  %176 = vmatprep.subr.mxu0 0.0
  %177 = vmatpush1.msra.mxu0 0.0
  %178 = vmatprep.subr.mxu0 0.0
  %179 = vmatpush1.msra.mxu0 0.0
  %180 = vmatprep.subr.mxu0 0.0
  %181 = vmatpush1.msra.mxu0 0.0
  %182 = vmatprep.subr.mxu0 0.0
  %183 = vmatpush1.msra.mxu0 0.0
  %184 = vmatprep.subr.mxu0 0.0
  %185 = vmatpush1.msra.mxu0 0.0
  %186 = vmatprep.subr.mxu0 0.0
  %187 = vmatpush1.msra.mxu0 0.0
  %188 = vmatprep.subr.mxu0 0.0
  %189 = vmatpush1.msra.mxu0 0.0
  %190 = vmatprep.subr.mxu0 0.0
  %191 = vmatpush1.msra.mxu0 0.0
  %192 = vmatprep.subr.mxu0 0.0
  %193 = vmatpush1.msra.mxu0 0.0
  %194 = vmatprep.subr.mxu0 0.0
  %195 = vmatpush1.msra.mxu0 0.0
  %196 = vmatprep.subr.mxu0 0.0
  %197 = vmatpush1.msra.mxu0 0.0
  %198 = vmatprep.subr.mxu0 0.0
  %199 = vmatpush1.msra.mxu0 0.0
  %200 = vmatprep.mubr.f32.mxu0 0.0
  %201 = vmatmul.mubr.f32.gmra.mrb[0].mxu0 %v85
  %v202 = vpop.f32.mrb[0].mxu0
  %v203 = vadd.f32 0.0, %v202
  %v204 = vpop.f32.mrb[0].mxu0
  %205 = vmatprep.mubr.f32.mxu0 0.0
  %206 = vmatmul.mubr.f32.gmra.mrb[0].mxu0 %v88
  %v207 = vpop.f32.mrb[0].mxu0
  %v208 = vadd.f32 0.0, %v207
  %v209 = vpop.f32.mrb[0].mxu0
  %210 = vmatprep.mubr.f32.mxu0 0.0
  %211 = vmatmul.mubr.f32.gmra.mrb[0].mxu0 %v91
  %v212 = vpop.f32.mrb[0].mxu0
  %v213 = vadd.f32 0.0, %v212
  %v214 = vpop.f32.mrb[0].mxu0
  %215 = vmatprep.mubr.f32.mxu0 0.0
  %216 = vmatmul.mubr.f32.gmra.mrb[0].mxu0 %v94
  %v217 = vpop.f32.mrb[0].mxu0
  %v218 = vadd.f32 0.0, %v217
  %v219 = vpop.f32.mrb[0].mxu0
  %220 = vmatprep.mubr.f32.mxu0 0.0
  %221 = vmatmul.mubr.f32.gmra.mrb[0].mxu0 %v97
  %v222 = vpop.f32.mrb[0].mxu0
  %v223 = vadd.f32 0.0, %v222
  %v224 = vpop.f32.mrb[0].mxu0
  %225 = vmatprep.mubr.f32.mxu0 0.0
  %226 = vmatmul.mubr.f32.gmra.mrb[0].mxu0 %v100
  %v227 = vpop.f32.mrb[0].mxu0
  %v228 = vadd.f32 0.0, %v227
  %v229 = vpop.f32.mrb[0].mxu0
  %230 = vmatprep.mubr.f32.mxu0 0.0
  %231 = vmatmul.mubr.f32.gmra.mrb[0].mxu0 %v103
  %v232 = vpop.f32.mrb[0].mxu0
  %v233 = vadd.f32 0.0, %v232
  %v234 = vpop.f32.mrb[0].mxu0
  %235 = vmatprep.mubr.f32.mxu0 0.0
  %236 = vmatmul.mubr.f32.gmra.mrb[0].mxu0 %v106
  %v237 = vpop.f32.mrb[0].mxu0
  %v238 = vadd.f32 0.0, %v237
  %v239 = vpop.f32.mrb[0].mxu0
  %240 = vmatprep.mubr.f32.mxu0 0.0
  %241 = vmatmul.mubr.f32.gmra.mrb[0].mxu0 %v109
  %v242 = vpop.f32.mrb[0].mxu0
  %v243 = vadd.f32 0.0, %v242
  %v244 = vpop.f32.mrb[0].mxu0
  %245 = vmatprep.mubr.f32.mxu0 0.0
  %246 = vmatmul.mubr.f32.gmra.mrb[0].mxu0 %v112
  %v247 = vpop.f32.mrb[0].mxu0
  %v248 = vadd.f32 0.0, %v247
  %v249 = vpop.f32.mrb[0].mxu0
  %250 = vmatprep.mubr.f32.mxu0 0.0
  %251 = vmatmul.mubr.f32.gmra.mrb[0].mxu0 %v115
  %v252 = vpop.f32.mrb[0].mxu0
  %v253 = vadd.f32 0.0, %v252
  %v254 = vpop.f32.mrb[0].mxu0
  %255 = vmatprep.mubr.f32.mxu0 0.0
  %256 = vmatmul.mubr.f32.gmra.mrb[0].mxu0 %v118
  %v257 = vpop.f32.mrb[0].mxu0
  %v258 = vadd.f32 0.0, %v257
  %v259 = vpop.f32.mrb[0].mxu0
  %260 = vmatprep.mubr.f32.mxu0 0.0
  %261 = vmatmul.mubr.f32.gmra.mrb[0].mxu0 %v121
  %v262 = vpop.f32.mrb[0].mxu0
  %v263 = vadd.f32 0.0, %v262
  %v264 = vpop.f32.mrb[0].mxu0
  %265 = vmatprep.mubr.f32.mxu0 0.0
  %266 = vmatmul.mubr.f32.gmra.mrb[0].mxu0 %v124
  %v267 = vpop.f32.mrb[0].mxu0
  %v268 = vadd.f32 0.0, %v267
  %v269 = vpop.f32.mrb[0].mxu0
  %270 = vmatprep.mubr.f32.mxu0 0.0
  %271 = vmatmul.mubr.f32.gmra.mrb[0].mxu0 %v127
  %v272 = vpop.f32.mrb[0].mxu0
  %v273 = vadd.f32 0.0, %v272
  %v274 = vpop.f32.mrb[0].mxu0
  %275 = vmatprep.mubr.f32.mxu0 0.0
  %276 = vmatmul.mubr.f32.gmra.mrb[0].mxu0 %v130
  %v277 = vpop.f32.mrb[0].mxu0
  %v278 = vadd.f32 0.0, %v277
  %v279 = vpop.f32.mrb[0].mxu0
  %280 = vdwg.mxu0
  %v281 = vld [vmem:[%s2] sm:$0xf]
  %298 = vrot.lane.b32.xlu0 %v66, 124
  %v299 = vpop.permute.xlu0 %298
  %300 = vrot.lane.b32.xlu0 %v67, 124
  %v301 = vpop.permute.xlu0 %300
  %302 = vrot.lane.b32.xlu0 %v68, 124
  %v303 = vpop.permute.xlu0 %302
  %304 = vrot.lane.b32.xlu0 %v69, 124
  %v305 = vpop.permute.xlu0 %304
  %306 = vrot.lane.b32.xlu0 %v70, 124
  %v307 = vpop.permute.xlu0 %306
  %308 = vrot.lane.b32.xlu0 %v71, 124
  %v309 = vpop.permute.xlu0 %308
  %310 = vrot.lane.b32.xlu0 %v72, 124
  %v311 = vpop.permute.xlu0 %310
  %312 = vrot.lane.b32.xlu0 %v73, 124
  %v313 = vpop.permute.xlu0 %312
  %314 = vrot.lane.b32.xlu0 %v74, 124
  %v315 = vpop.permute.xlu0 %314
  %316 = vrot.lane.b32.xlu0 %v75, 124
  %v317 = vpop.permute.xlu0 %316
  %318 = vrot.lane.b32.xlu0 %v76, 124
  %v319 = vpop.permute.xlu0 %318
  %320 = vrot.lane.b32.xlu0 %v77, 124
  %v321 = vpop.permute.xlu0 %320
  %322 = vrot.lane.b32.xlu0 %v78, 124
  %v323 = vpop.permute.xlu0 %322
  %324 = vrot.lane.b32.xlu0 %v79, 124
  %v325 = vpop.permute.xlu0 %324
  %326 = vrot.lane.b32.xlu0 %v80, 124
  %v327 = vpop.permute.xlu0 %326
  %328 = vrot.lane.b32.xlu0 %v81, 124
  %v329 = vpop.permute.xlu0 %328
  %v330 = vsel %vm83, %v299, 0
  %v332 = vsel %vm83, %v301, 0
  %v334 = vsel %vm83, %v303, 0
  %v336 = vsel %vm83, %v305, 0
  %v338 = vsel %vm83, %v307, 0
  %v340 = vsel %vm83, %v309, 0
  %v342 = vsel %vm83, %v311, 0
  %v344 = vsel %vm83, %v313, 0
  %v346 = vsel %vm83, %v315, 0
  %v348 = vsel %vm83, %v317, 0
  %v350 = vsel %vm83, %v319, 0
  %v352 = vsel %vm83, %v321, 0
  %v354 = vsel %vm83, %v323, 0
  %v356 = vsel %vm83, %v325, 0
  %v358 = vsel %vm83, %v327, 0
  %v360 = vsel %vm83, %v329, 0
  %v363 = vsel %vm132, %v281, 0
  %365 = vmatprep.subr.mxu0 0.0
  %366 = vmatpush1.msra.mxu0 %v363
  %367 = vmatprep.subr.mxu0 0.0
  %368 = vmatpush1.msra.mxu0 0.0
  %369 = vmatprep.subr.mxu0 0.0
  %370 = vmatpush1.msra.mxu0 0.0
  %371 = vmatprep.subr.mxu0 0.0
  %372 = vmatpush1.msra.mxu0 0.0
  %373 = vmatprep.subr.mxu0 0.0
  %374 = vmatpush1.msra.mxu0 0.0
  %375 = vmatprep.subr.mxu0 0.0
  %376 = vmatpush1.msra.mxu0 0.0
  %377 = vmatprep.subr.mxu0 0.0
  %378 = vmatpush1.msra.mxu0 0.0
  %379 = vmatprep.subr.mxu0 0.0
  %380 = vmatpush1.msra.mxu0 0.0
  %381 = vmatprep.subr.mxu0 0.0
  %382 = vmatpush1.msra.mxu0 0.0
  %383 = vmatprep.subr.mxu0 0.0
  %384 = vmatpush1.msra.mxu0 0.0
  %385 = vmatprep.subr.mxu0 0.0
  %386 = vmatpush1.msra.mxu0 0.0
  %387 = vmatprep.subr.mxu0 0.0
  %388 = vmatpush1.msra.mxu0 0.0
  %389 = vmatprep.subr.mxu0 0.0
  %390 = vmatpush1.msra.mxu0 0.0
  %391 = vmatprep.subr.mxu0 0.0
  %392 = vmatpush1.msra.mxu0 0.0
  %393 = vmatprep.subr.mxu0 0.0
  %394 = vmatpush1.msra.mxu0 0.0
  %395 = vmatprep.subr.mxu0 0.0
  %396 = vmatpush1.msra.mxu0 0.0
  %397 = vmatprep.subr.mxu0 0.0
  %398 = vmatpush1.msra.mxu0 0.0
  %399 = vmatprep.subr.mxu0 0.0
  %400 = vmatpush1.msra.mxu0 0.0
  %401 = vmatprep.subr.mxu0 0.0
  %402 = vmatpush1.msra.mxu0 0.0
  %403 = vmatprep.subr.mxu0 0.0
  %404 = vmatpush1.msra.mxu0 0.0
  %405 = vmatprep.subr.mxu0 0.0
  %406 = vmatpush1.msra.mxu0 0.0
  %407 = vmatprep.subr.mxu0 0.0
  %408 = vmatpush1.msra.mxu0 0.0
  %409 = vmatprep.subr.mxu0 0.0
  %410 = vmatpush1.msra.mxu0 0.0
  %411 = vmatprep.subr.mxu0 0.0
  %412 = vmatpush1.msra.mxu0 0.0
  %413 = vmatprep.subr.mxu0 0.0
  %414 = vmatpush1.msra.mxu0 0.0
  %415 = vmatprep.subr.mxu0 0.0
  %416 = vmatpush1.msra.mxu0 0.0
  %417 = vmatprep.subr.mxu0 0.0
  %418 = vmatpush1.msra.mxu0 0.0
  %419 = vmatprep.subr.mxu0 0.0
  %420 = vmatpush1.msra.mxu0 0.0
  %421 = vmatprep.subr.mxu0 0.0
  %422 = vmatpush1.msra.mxu0 0.0
  %423 = vmatprep.subr.mxu0 0.0
  %424 = vmatpush1.msra.mxu0 0.0
  %425 = vmatprep.subr.mxu0 0.0
  %426 = vmatpush1.msra.mxu0 0.0
  %427 = vmatprep.subr.mxu0 0.0
  %428 = vmatpush1.msra.mxu0 0.0
  %429 = vmatprep.mubr.f32.mxu0 0.0
  %430 = vmatmul.mubr.f32.gmra.mrb[0].mxu0 %v330
  %v431 = vpop.f32.mrb[0].mxu0
  %v432 = vadd.f32 0.0, %v431
  %v433 = vpop.f32.mrb[0].mxu0
  %434 = vmatprep.mubr.f32.mxu0 0.0
  %435 = vmatmul.mubr.f32.gmra.mrb[0].mxu0 %v332
  %v436 = vpop.f32.mrb[0].mxu0
  %v437 = vadd.f32 0.0, %v436
  %v438 = vpop.f32.mrb[0].mxu0
  %439 = vmatprep.mubr.f32.mxu0 0.0
  %440 = vmatmul.mubr.f32.gmra.mrb[0].mxu0 %v334
  %v441 = vpop.f32.mrb[0].mxu0
  %v442 = vadd.f32 0.0, %v441
  %v443 = vpop.f32.mrb[0].mxu0
  %444 = vmatprep.mubr.f32.mxu0 0.0
  %445 = vmatmul.mubr.f32.gmra.mrb[0].mxu0 %v336
  %v446 = vpop.f32.mrb[0].mxu0
  %v447 = vadd.f32 0.0, %v446
  %v448 = vpop.f32.mrb[0].mxu0
  %449 = vmatprep.mubr.f32.mxu0 0.0
  %450 = vmatmul.mubr.f32.gmra.mrb[0].mxu0 %v338
  %v451 = vpop.f32.mrb[0].mxu0
  %v452 = vadd.f32 0.0, %v451
  %v453 = vpop.f32.mrb[0].mxu0
  %454 = vmatprep.mubr.f32.mxu0 0.0
  %455 = vmatmul.mubr.f32.gmra.mrb[0].mxu0 %v340
  %v456 = vpop.f32.mrb[0].mxu0
  %v457 = vadd.f32 0.0, %v456
  %v458 = vpop.f32.mrb[0].mxu0
  %459 = vmatprep.mubr.f32.mxu0 0.0
  %460 = vmatmul.mubr.f32.gmra.mrb[0].mxu0 %v342
  %v461 = vpop.f32.mrb[0].mxu0
  %v462 = vadd.f32 0.0, %v461
  %v463 = vpop.f32.mrb[0].mxu0
  %464 = vmatprep.mubr.f32.mxu0 0.0
  %465 = vmatmul.mubr.f32.gmra.mrb[0].mxu0 %v344
  %v466 = vpop.f32.mrb[0].mxu0
  %v467 = vadd.f32 0.0, %v466
  %v468 = vpop.f32.mrb[0].mxu0
  %469 = vmatprep.mubr.f32.mxu0 0.0
  %470 = vmatmul.mubr.f32.gmra.mrb[0].mxu0 %v346
  %v471 = vpop.f32.mrb[0].mxu0
  %v472 = vadd.f32 0.0, %v471
  %v473 = vpop.f32.mrb[0].mxu0
  %474 = vmatprep.mubr.f32.mxu0 0.0
  %475 = vmatmul.mubr.f32.gmra.mrb[0].mxu0 %v348
  %v476 = vpop.f32.mrb[0].mxu0
  %v477 = vadd.f32 0.0, %v476
  %v478 = vpop.f32.mrb[0].mxu0
  %479 = vmatprep.mubr.f32.mxu0 0.0
  %480 = vmatmul.mubr.f32.gmra.mrb[0].mxu0 %v350
  %v481 = vpop.f32.mrb[0].mxu0
  %v482 = vadd.f32 0.0, %v481
  %v483 = vpop.f32.mrb[0].mxu0
  %484 = vmatprep.mubr.f32.mxu0 0.0
  %485 = vmatmul.mubr.f32.gmra.mrb[0].mxu0 %v352
  %v486 = vpop.f32.mrb[0].mxu0
  %v487 = vadd.f32 0.0, %v486
  %v488 = vpop.f32.mrb[0].mxu0
  %489 = vmatprep.mubr.f32.mxu0 0.0
  %490 = vmatmul.mubr.f32.gmra.mrb[0].mxu0 %v354
  %v491 = vpop.f32.mrb[0].mxu0
  %v492 = vadd.f32 0.0, %v491
  %v493 = vpop.f32.mrb[0].mxu0
  %494 = vmatprep.mubr.f32.mxu0 0.0
  %495 = vmatmul.mubr.f32.gmra.mrb[0].mxu0 %v356
  %v496 = vpop.f32.mrb[0].mxu0
  %v497 = vadd.f32 0.0, %v496
  %v498 = vpop.f32.mrb[0].mxu0
  %499 = vmatprep.mubr.f32.mxu0 0.0
  %500 = vmatmul.mubr.f32.gmra.mrb[0].mxu0 %v358
  %v501 = vpop.f32.mrb[0].mxu0
  %v502 = vadd.f32 0.0, %v501
  %v503 = vpop.f32.mrb[0].mxu0
  %504 = vmatprep.mubr.f32.mxu0 0.0
  %505 = vmatmul.mubr.f32.gmra.mrb[0].mxu0 %v360
  %v506 = vpop.f32.mrb[0].mxu0
  %v507 = vadd.f32 0.0, %v506
  %v508 = vpop.f32.mrb[0].mxu0
  %509 = vdwg.mxu0
  %v510 = vld [vmem:[%s3] sm:$0x1]
  %v511 = vlaneseq
  %v512 = vshrl.u32 %v511, 7
  %v513 = vsub.s32 0, %v512
  %v514 = vrot.slane %v510, %v513
  %v515 = vmul.f32 %v203, %v514
  %v516 = vmul.f32 %v208, %v514
  %v517 = vmul.f32 %v213, %v514
  %v518 = vmul.f32 %v218, %v514
  %v519 = vmul.f32 %v223, %v514
  %v520 = vmul.f32 %v228, %v514
  %v521 = vmul.f32 %v233, %v514
  %v522 = vmul.f32 %v238, %v514
  %v523 = vmul.f32 %v243, %v514
  %v524 = vmul.f32 %v248, %v514
  %v525 = vmul.f32 %v253, %v514
  %v526 = vmul.f32 %v258, %v514
  %v527 = vmul.f32 %v263, %v514
  %v528 = vmul.f32 %v268, %v514
  %v529 = vmul.f32 %v273, %v514
  %v530 = vmul.f32 %v278, %v514
  %v531 = vld [vmem:[%s3 + $0x1] sm:$0x1]
  %v532 = vlaneseq
  %v533 = vshrl.u32 %v532, 7
  %v534 = vsub.s32 0, %v533
  %v535 = vrot.slane %v531, %v534
  %v536 = vadd.f32 %v515, %v535
  %v537 = vadd.f32 %v516, %v535
  %v538 = vadd.f32 %v517, %v535
  %v539 = vadd.f32 %v518, %v535
  %v540 = vadd.f32 %v519, %v535
  %v541 = vadd.f32 %v520, %v535
  %v542 = vadd.f32 %v521, %v535
  %v543 = vadd.f32 %v522, %v535
  %v544 = vadd.f32 %v523, %v535
  %v545 = vadd.f32 %v524, %v535
  %v546 = vadd.f32 %v525, %v535
  %v547 = vadd.f32 %v526, %v535
  %v548 = vadd.f32 %v527, %v535
  %v549 = vadd.f32 %v528, %v535
  %v550 = vadd.f32 %v529, %v535
  %v551 = vadd.f32 %v530, %v535
  %553 = vrot.lane.b32.xlu0 %v514, 124
  %v554 = vpop.permute.xlu0 %553
  %v556 = vmul.f32 %v432, %v554
  %v557 = vmul.f32 %v437, %v554
  %v558 = vmul.f32 %v442, %v554
  %v559 = vmul.f32 %v447, %v554
  %v560 = vmul.f32 %v452, %v554
  %v561 = vmul.f32 %v457, %v554
  %v562 = vmul.f32 %v462, %v554
  %v563 = vmul.f32 %v467, %v554
  %v564 = vmul.f32 %v472, %v554
  %v565 = vmul.f32 %v477, %v554
  %v566 = vmul.f32 %v482, %v554
  %v567 = vmul.f32 %v487, %v554
  %v568 = vmul.f32 %v492, %v554
  %v569 = vmul.f32 %v497, %v554
  %v570 = vmul.f32 %v502, %v554
  %v571 = vmul.f32 %v507, %v554
  %573 = vrot.lane.b32.xlu0 %v535, 124
  %v574 = vpop.permute.xlu0 %573
  %v576 = vadd.f32 %v556, %v574
  %v577 = vadd.f32 %v557, %v574
  %v578 = vadd.f32 %v558, %v574
  %v579 = vadd.f32 %v559, %v574
  %v580 = vadd.f32 %v560, %v574
  %v581 = vadd.f32 %v561, %v574
  %v582 = vadd.f32 %v562, %v574
  %v583 = vadd.f32 %v563, %v574
  %v584 = vadd.f32 %v564, %v574
  %v585 = vadd.f32 %v565, %v574
  %v586 = vadd.f32 %v566, %v574
  %v587 = vadd.f32 %v567, %v574
  %v588 = vadd.f32 %v568, %v574
  %v589 = vadd.f32 %v569, %v574
  %v590 = vadd.f32 %v570, %v574
  %v591 = vadd.f32 %v571, %v574
  %592 = vst.msk [vmem:[%s4] sm:$0xff] %vm83, %v536
  %593 = vst.msk [vmem:[%s4 + $0x8] sm:$0xff] %vm83, %v537
  %594 = vst.msk [vmem:[%s4 + $0x10] sm:$0xff] %vm83, %v538
  %595 = vst.msk [vmem:[%s4 + $0x18] sm:$0xff] %vm83, %v539
  %596 = vst.msk [vmem:[%s4 + $0x20] sm:$0xff] %vm83, %v540
  %597 = vst.msk [vmem:[%s4 + $0x28] sm:$0xff] %vm83, %v541
  %598 = vst.msk [vmem:[%s4 + $0x30] sm:$0xff] %vm83, %v542
  %599 = vst.msk [vmem:[%s4 + $0x38] sm:$0xff] %vm83, %v543
  %600 = vst.msk [vmem:[%s4 + $0x40] sm:$0xff] %vm83, %v544
  %601 = vst.msk [vmem:[%s4 + $0x48] sm:$0xff] %vm83, %v545
  %602 = vst.msk [vmem:[%s4 + $0x50] sm:$0xff] %vm83, %v546
  %603 = vst.msk [vmem:[%s4 + $0x58] sm:$0xff] %vm83, %v547
  %604 = vst.msk [vmem:[%s4 + $0x60] sm:$0xff] %vm83, %v548
  %605 = vst.msk [vmem:[%s4 + $0x68] sm:$0xff] %vm83, %v549
  %606 = vst.msk [vmem:[%s4 + $0x70] sm:$0xff] %vm83, %v550
  %607 = vst.msk [vmem:[%s4 + $0x78] sm:$0xff] %vm83, %v551
  %624 = vrot.lane.b32.xlu0 %v576, 4
  %v625 = vpop.permute.xlu0 %624
  %626 = vrot.lane.b32.xlu0 %v577, 4
  %v627 = vpop.permute.xlu0 %626
  %628 = vrot.lane.b32.xlu0 %v578, 4
  %v629 = vpop.permute.xlu0 %628
  %630 = vrot.lane.b32.xlu0 %v579, 4
  %v631 = vpop.permute.xlu0 %630
  %632 = vrot.lane.b32.xlu0 %v580, 4
  %v633 = vpop.permute.xlu0 %632
  %634 = vrot.lane.b32.xlu0 %v581, 4
  %v635 = vpop.permute.xlu0 %634
  %636 = vrot.lane.b32.xlu0 %v582, 4
  %v637 = vpop.permute.xlu0 %636
  %638 = vrot.lane.b32.xlu0 %v583, 4
  %v639 = vpop.permute.xlu0 %638
  %640 = vrot.lane.b32.xlu0 %v584, 4
  %v641 = vpop.permute.xlu0 %640
  %642 = vrot.lane.b32.xlu0 %v585, 4
  %v643 = vpop.permute.xlu0 %642
  %644 = vrot.lane.b32.xlu0 %v586, 4
  %v645 = vpop.permute.xlu0 %644
  %646 = vrot.lane.b32.xlu0 %v587, 4
  %v647 = vpop.permute.xlu0 %646
  %648 = vrot.lane.b32.xlu0 %v588, 4
  %v649 = vpop.permute.xlu0 %648
  %650 = vrot.lane.b32.xlu0 %v589, 4
  %v651 = vpop.permute.xlu0 %650
  %652 = vrot.lane.b32.xlu0 %v590, 4
  %v653 = vpop.permute.xlu0 %652
  %654 = vrot.lane.b32.xlu0 %v591, 4
  %v655 = vpop.permute.xlu0 %654
  %vm672 = vcmask 64544
  %673 = vst.msk [vmem:[%s4] sm:$0xff] %vm672, %v625
  %674 = vst.msk [vmem:[%s4 + $0x8] sm:$0xff] %vm672, %v627
  %675 = vst.msk [vmem:[%s4 + $0x10] sm:$0xff] %vm672, %v629
  %676 = vst.msk [vmem:[%s4 + $0x18] sm:$0xff] %vm672, %v631
  %677 = vst.msk [vmem:[%s4 + $0x20] sm:$0xff] %vm672, %v633
  %678 = vst.msk [vmem:[%s4 + $0x28] sm:$0xff] %vm672, %v635
  %679 = vst.msk [vmem:[%s4 + $0x30] sm:$0xff] %vm672, %v637
  %680 = vst.msk [vmem:[%s4 + $0x38] sm:$0xff] %vm672, %v639
  %681 = vst.msk [vmem:[%s4 + $0x40] sm:$0xff] %vm672, %v641
  %682 = vst.msk [vmem:[%s4 + $0x48] sm:$0xff] %vm672, %v643
  %683 = vst.msk [vmem:[%s4 + $0x50] sm:$0xff] %vm672, %v645
  %684 = vst.msk [vmem:[%s4 + $0x58] sm:$0xff] %vm672, %v647
  %685 = vst.msk [vmem:[%s4 + $0x60] sm:$0xff] %vm672, %v649
  %686 = vst.msk [vmem:[%s4 + $0x68] sm:$0xff] %vm672, %v651
  %687 = vst.msk [vmem:[%s4 + $0x70] sm:$0xff] %vm672, %v653
  %688 = vst.msk [vmem:[%s4 + $0x78] sm:$0xff] %vm672, %v655
  // Predicated region
  $region18: #{factorized_reduce.3} parent=0 // pred_check
    _
  $region19: #{factorized_reduce.3} parent=0 // pred_check_branch
    %690 = sbr.rel (0) target = $region21
  $region20: #{factorized_reduce.3} parent=0 // pred_region
    _
  $region21: #{factorized_reduce.3} parent=0 // pred_fallthru
    _
  // Predicated region
  $region22: #{factorized_reduce.3} parent=0 // pred_check
    _
  $region23: #{factorized_reduce.3} parent=0 // pred_check_branch
    %692 = sbr.rel (0) target = $region25
  $region24: #{factorized_reduce.3} parent=0 // pred_region
    _
  $region25: #{factorized_reduce.3} parent=0 // pred_fallthru
    _

</llo_original>
